<compile_context>
chip_gen: v6e
topology: v6e:2x2x1
jax: 0.10.0
libtpu: 0.0.40
codegen_flags: <defaults>
</compile_context>

<pallas_src>
import jax
import jax.numpy as jnp
from jax.experimental import pallas as pl
from jax.experimental.pallas import tpu as pltpu

LATENT_DIM = 64
HIDDEN_DIM = 512
OUTPUT_DIM = 28 * 28   # 784 (MNIST)
NEG_SLOPE = 0.01       # F.leaky_relu default


def _round_up(x, m):
    return (x + m - 1) // m * m


def _decoder_kernel(x_ref, w1_ref, b1_ref, w2_ref, b2_ref, o_ref):
    # fc1: bf16 MXU matmul, f32 accumulation; bias + leaky_relu in f32.
    h = jnp.dot(x_ref[...], w1_ref[...], preferred_element_type=jnp.float32)
    h = h + b1_ref[...]                        # (1, H) broadcasts over batch tile
    h = jnp.maximum(h, NEG_SLOPE * h)          # exact leaky_relu, no select

    # fc2: cast activations to bf16 for the MXU, accumulate in f32.
    y = jnp.dot(h.astype(w2_ref.dtype), w2_ref[...],
                preferred_element_type=jnp.float32)
    y = y + b2_ref[...]                        # (1, 784)
    o_ref[...] = jax.nn.sigmoid(y).astype(o_ref.dtype)   # exp/recip on the EUP


def prepare_params(w1, b1, w2, b2):
    """One-time parameter prep (do NOT call per forward pass).

    Casts weights to bf16 (halves weight DMA, native MXU rate) and keeps
    biases in f32 (added into the f32 accumulator). Weights are expected as
    (in_features, out_features) = PyTorch weight.T; biases as (1, out).
    """
    return (w1.astype(jnp.bfloat16),
            b1.astype(jnp.float32).reshape(1, -1),
            w2.astype(jnp.bfloat16),
            b2.astype(jnp.float32).reshape(1, -1))


def decoder_forward(x, params, *, block_b=512, out_dtype=jnp.float32):
    """Fused decoder: sigmoid(leaky_relu(x @ w1 + b1) @ w2 + b2).

    x:      [B, latent] (any float dtype; cast to bf16 for the MXU)
    params: output of prepare_params (bf16 w1/w2, f32 b1/b2)
    Returns [B, out_dim] in `out_dtype` (use bf16 to halve output writeback
    if the consumer tolerates it).
    """
    w1b, b1f, w2b, b2f = params
    B, latent = x.shape
    hidden = w1b.shape[1]
    out_dim = w2b.shape[1]

    # ---- batch tiling ------------------------------------------------------
    b_pad8 = _round_up(max(B, 8), 8)           # f32 sublane multiple
    tb = min(block_b, b_pad8)
    # Large batch that fits one tile: split into two "parallel" tiles so the
    # second TensorCore on v7x isn't idle (one extra ~0.35us grid step on
    # single-TC chips is negligible at this tile size).
    if b_pad8 <= tb and tb >= 512:
        tb = _round_up((tb + 1) // 2, 8)
    b_pad = _round_up(b_pad8, tb)
    grid = (b_pad // tb,)

    xb = x.astype(jnp.bfloat16)
    if b_pad != B:
        xb = jnp.zeros((b_pad, latent), jnp.bfloat16).at[:B].set(xb)

    out_itemsize = jnp.dtype(out_dtype).itemsize
    cost = pl.CostEstimate(
        flops=2 * b_pad * (latent * hidden + hidden * out_dim),
        transcendentals=b_pad * out_dim,
        bytes_accessed=(xb.size * 2 + w1b.size * 2 + w2b.size * 2
                        + b1f.size * 4 + b2f.size * 4
                        + b_pad * out_dim * out_itemsize),
    )

    out = pl.pallas_call(
        _decoder_kernel,
        out_shape=jax.ShapeDtypeStruct((b_pad, out_dim), out_dtype),
        grid=grid,
        in_specs=[
            pl.BlockSpec((tb, latent), lambda i: (i, 0)),      # x batch tile
            pl.BlockSpec((latent, hidden), lambda i: (0, 0)),  # resident w1
            pl.BlockSpec((1, hidden), lambda i: (0, 0)),       # resident b1
            pl.BlockSpec((hidden, out_dim), lambda i: (0, 0)), # resident w2
            pl.BlockSpec((1, out_dim), lambda i: (0, 0)),      # resident b2
        ],
        # Block last dim == full array dim (784): lane stores have only a
        # masked 16-lane tail vreg, and no wrapper-side column slice exists.
        out_specs=pl.BlockSpec((tb, out_dim), lambda i: (i, 0)),
        compiler_params=pltpu.CompilerParams(
            dimension_semantics=("parallel",),       # shard batch tiles across TCs
            vmem_limit_bytes=32 * 1024 * 1024,       # footprint ~6 MiB @ tb=512
        ),
        cost_estimate=cost,
    )(xb, w1b, b1f, w2b, b2f)

    # Only pay a batch-dim slice when B was actually padded.
    return out if b_pad == B else out[:B]


def init_params(key, latent_dim, hidden_dim, output_dim):
    """Deterministic synthetic params. Stored as (in, out) = PyTorch weight.T."""
    k1, k2, k3, k4 = jax.random.split(key, 4)
    s1 = 1.0 / (latent_dim ** 0.5)
    s2 = 1.0 / (hidden_dim ** 0.5)
    w1 = jax.random.uniform(k1, (latent_dim, hidden_dim), jnp.float32, -s1, s1)
    b1 = jax.random.uniform(k2, (1, hidden_dim), jnp.float32, -s1, s1)
    w2 = jax.random.uniform(k3, (hidden_dim, output_dim), jnp.float32, -s2, s2)
    b2 = jax.random.uniform(k4, (1, output_dim), jnp.float32, -s2, s2)
    return w1, b1, w2, b2


def decoder_reference(x, w1, b1, w2, b2):
    """Pure-JAX reference using the same bf16-weight / f32-accum numerics."""
    h = jnp.dot(x.astype(jnp.bfloat16), w1.astype(jnp.bfloat16),
                preferred_element_type=jnp.float32) + b1
    h = jnp.maximum(h, NEG_SLOPE * h)
    y = jnp.dot(h.astype(jnp.bfloat16), w2.astype(jnp.bfloat16),
                preferred_element_type=jnp.float32) + b2
    return jax.nn.sigmoid(y)


if __name__ == "__main__":
    key = jax.random.PRNGKey(0)
    kx, kp = jax.random.split(key)

    w1, b1, w2, b2 = init_params(kp, LATENT_DIM, HIDDEN_DIM, OUTPUT_DIM)
    params = prepare_params(w1, b1, w2, b2)     # one-time prep, hoisted

    # Small batch: single grid step, batch block == full array dim.
    B = 8
    x = jax.random.normal(kx, (B, LATENT_DIM), jnp.float32)
    out = jax.block_until_ready(decoder_forward(x, params))
    ref = decoder_reference(x, w1, b1, w2, b2)
    assert out.shape == (B, OUTPUT_DIM)
    assert jnp.allclose(out, ref, atol=2e-3, rtol=2e-3), "mismatch (B=8)"

    # Medium batch, not a multiple of 128: single tile, no padding, no slice.
    B2 = 200
    x2 = jax.random.normal(kx, (B2, LATENT_DIM), jnp.float32)
    out2 = jax.block_until_ready(decoder_forward(x2, params))
    ref2 = decoder_reference(x2, w1, b1, w2, b2)
    assert out2.shape == (B2, OUTPUT_DIM)
    assert jnp.allclose(out2, ref2, atol=2e-3, rtol=2e-3), "mismatch (B=200)"

    # Large batch: exercises the 2-tile split (grid=2, "parallel" batch axis).
    B3 = 512
    x3 = jax.random.normal(kx, (B3, LATENT_DIM), jnp.float32)
    out3 = jax.block_until_ready(decoder_forward(x3, params))
    ref3 = decoder_reference(x3, w1, b1, w2, b2)
    assert out3.shape == (B3, OUTPUT_DIM)
    assert jnp.allclose(out3, ref3, atol=2e-3, rtol=2e-3), "mismatch (B=512)"

    # Optional bf16 output path (halves output writeback), looser tolerance.
    out_bf16 = jax.block_until_ready(
        decoder_forward(x2, params, out_dtype=jnp.bfloat16))
    assert out_bf16.dtype == jnp.bfloat16
    assert jnp.allclose(out_bf16.astype(jnp.float32), ref2, atol=1e-2, rtol=1e-2), \
        "mismatch (bf16 output)"

    print("KERNEL_OK")
</pallas_src>

<mosaic_0001>
module attributes {stable_mosaic.version = 11 : i64} {
  func.func @_decoder_kernel(%arg0: i32, %arg1: memref<8x64xbf16, #tpu.memory_space<vmem>>, %arg2: memref<64x512xbf16, #tpu.memory_space<vmem>>, %arg3: memref<1x512xf32, #tpu.memory_space<vmem>>, %arg4: memref<512x784xbf16, #tpu.memory_space<vmem>>, %arg5: memref<1x784xf32, #tpu.memory_space<vmem>>, %arg6: memref<8x784xf32, #tpu.memory_space<vmem>>) attributes {dimension_semantics = [#tpu.dimension_semantics<parallel>], iteration_bounds = array<i64: 1>, scalar_prefetch = 0 : i64, scratch_operands = 0 : i64, tpu.core_type = #tpu.core_type<tc>, window_params = [{transform_indices = @transform_0, window_bounds = array<i64: 8, 64>}, {pipeline_mode = #tpu.pipeline_mode<synchronous>, transform_indices = @transform_1, window_bounds = array<i64: 64, 512>}, {pipeline_mode = #tpu.pipeline_mode<synchronous>, transform_indices = @transform_2, window_bounds = array<i64: 1, 512>}, {pipeline_mode = #tpu.pipeline_mode<synchronous>, transform_indices = @transform_3, window_bounds = array<i64: 512, 784>}, {pipeline_mode = #tpu.pipeline_mode<synchronous>, transform_indices = @transform_4, window_bounds = array<i64: 1, 784>}, {transform_indices = @transform_5, window_bounds = array<i64: 8, 784>}]} {
    %c0 = arith.constant 0 : index
    %c0_0 = arith.constant 0 : index
    %0 = vector.load %arg1[%c0, %c0_0] : memref<8x64xbf16, #tpu.memory_space<vmem>>, vector<8x64xbf16>
    %c0_1 = arith.constant 0 : index
    %c0_2 = arith.constant 0 : index
    %1 = vector.load %arg2[%c0_1, %c0_2] : memref<64x512xbf16, #tpu.memory_space<vmem>>, vector<64x512xbf16>
    %cst = arith.constant dense<0.000000e+00> : vector<8x512xf32>
    %2 = tpu.matmul %0, %1, %cst {dimension_numbers = #tpu.dot_dimension_numbers<[1], [0], [0], [1], [0, 0, 1, 1], [], []>} : vector<8x64xbf16>, vector<64x512xbf16>, vector<8x512xf32> -> vector<8x512xf32>
    %c0_3 = arith.constant 0 : index
    %c0_4 = arith.constant 0 : index
    %3 = vector.load %arg3[%c0_3, %c0_4] : memref<1x512xf32, #tpu.memory_space<vmem>>, vector<1x512xf32>
    %4 = vector.broadcast %3 : vector<1x512xf32> to vector<8x512xf32>
    %5 = arith.addf %2, %4 : vector<8x512xf32>
    %cst_5 = arith.constant 0.00999999977 : f32
    %6 = vector.broadcast %cst_5 : f32 to vector<8x512xf32>
    %7 = arith.mulf %6, %5 : vector<8x512xf32>
    %8 = arith.maximumf %5, %7 : vector<8x512xf32>
    %9 = arith.truncf %8 : vector<8x512xf32> to vector<8x512xbf16>
    %c0_6 = arith.constant 0 : index
    %c0_7 = arith.constant 0 : index
    %10 = vector.load %arg4[%c0_6, %c0_7] : memref<512x784xbf16, #tpu.memory_space<vmem>>, vector<512x784xbf16>
    %cst_8 = arith.constant dense<0.000000e+00> : vector<8x784xf32>
    %11 = tpu.matmul %9, %10, %cst_8 {dimension_numbers = #tpu.dot_dimension_numbers<[1], [0], [0], [1], [0, 0, 1, 1], [], []>} : vector<8x512xbf16>, vector<512x784xbf16>, vector<8x784xf32> -> vector<8x784xf32>
    %c0_9 = arith.constant 0 : index
    %c0_10 = arith.constant 0 : index
    %12 = vector.load %arg5[%c0_9, %c0_10] : memref<1x784xf32, #tpu.memory_space<vmem>>, vector<1x784xf32>
    %13 = vector.broadcast %12 : vector<1x784xf32> to vector<8x784xf32>
    %14 = arith.addf %11, %13 : vector<8x784xf32>
    %15 = arith.negf %14 : vector<8x784xf32>
    %16 = math.exp %15 : vector<8x784xf32>
    %cst_11 = arith.constant 1.000000e+00 : f32
    %17 = vector.broadcast %cst_11 : f32 to vector<8x784xf32>
    %18 = arith.addf %17, %16 : vector<8x784xf32>
    %19 = arith.divf %17, %18 : vector<8x784xf32>
    %c0_12 = arith.constant 0 : index
    %c0_13 = arith.constant 0 : index
    %20 = vector.load %arg6[%c0_12, %c0_13] : memref<8x784xf32, #tpu.memory_space<vmem>>, vector<8x784xf32>
    tpu.vector_store %arg6[%c0_12, %c0_13], %19 {strides = array<i32>} : memref<8x784xf32, #tpu.memory_space<vmem>>, vector<8x784xf32>,
    return
  }
  func.func @transform_0(%arg0: i32) -> (i32, i32) {
    %c0_i32 = arith.constant 0 : i32
    %c0_i32_0 = arith.constant 0 : i32
    return %arg0, %c0_i32 : i32, i32
  }
  func.func @transform_1(%arg0: i32) -> (i32, i32) {
    %c0_i32 = arith.constant 0 : i32
    %c0_i32_0 = arith.constant 0 : i32
    %c0_i32_1 = arith.constant 0 : i32
    return %c0_i32, %c0_i32_0 : i32, i32
  }
  func.func @transform_2(%arg0: i32) -> (i32, i32) {
    %c0_i32 = arith.constant 0 : i32
    %c0_i32_0 = arith.constant 0 : i32
    %c0_i32_1 = arith.constant 0 : i32
    return %c0_i32, %c0_i32_0 : i32, i32
  }
  func.func @transform_3(%arg0: i32) -> (i32, i32) {
    %c0_i32 = arith.constant 0 : i32
    %c0_i32_0 = arith.constant 0 : i32
    %c0_i32_1 = arith.constant 0 : i32
    return %c0_i32, %c0_i32_0 : i32, i32
  }
  func.func @transform_4(%arg0: i32) -> (i32, i32) {
    %c0_i32 = arith.constant 0 : i32
    %c0_i32_0 = arith.constant 0 : i32
    %c0_i32_1 = arith.constant 0 : i32
    return %c0_i32, %c0_i32_0 : i32, i32
  }
  func.func @transform_5(%arg0: i32) -> (i32, i32) {
    %c0_i32 = arith.constant 0 : i32
    %c0_i32_0 = arith.constant 0 : i32
    return %arg0, %c0_i32 : i32, i32
  }
}

</mosaic_0001>

<llo_original>
// kernel: tpu_custom_call.1
$region0: #{tpu_custom_call.1}
  #allocation0 [shape = 'u32[]', space=smem, size = 0x4, offset = 0x4, fixed_abs, tag = 'smem constant byte address 0x4 - core index']
  #allocation1 [shape = 'u32[144,128]{1,0:T(1,128)}', space=vmem, size = 0x12000, scoped, tag = 'internal scratch']
  %s0 = inlined_call_operand.vmem [shape: bf16[8,64], index: 0, kind: input, shape index: {}]
  %s1 = inlined_call_operand.vmem [shape: bf16[64,512], index: 1, kind: input, shape index: {}]
  %s2 = inlined_call_operand.vmem [shape: f32[1,512], index: 2, kind: input, shape index: {}]
  %s3 = inlined_call_operand.vmem [shape: bf16[512,784], index: 3, kind: input, shape index: {}]
  %s4 = inlined_call_operand.vmem [shape: f32[1,784], index: 4, kind: input, shape index: {}]
  %s5 = inlined_call_operand.hbm [shape: f32[8,784], index: 5, kind: output, shape index: {}]
  %s6 = sld [smem:[#allocation0]]
  $region30: #{tpu_custom_call.1} parent=0
    _
  %s8 = ssub.s32 1, %s6
  %s9 = scalar_select 0, %s8, %s6
  $region1: #{tpu_custom_call.1} parent=0
    #allocation2 [shape = 'u8[28672]{0}', space=vmem, size = 0x7000, scoped, tag = 'output window, operand 0, single buffered']
    #allocation3 [shape = 's32[1]{0}', space=sflag, size = 0x4, scoped, tag = 'scoped memory for tpu_custom_call.1']
    %10 = vsyncpa [#allocation3], 0
    // Predicated region
    $region2: #{tpu_custom_call.1} parent=1 // pred_check
      _
    $region3: #{tpu_custom_call.1} parent=1 // pred_check_branch
      %12 = sbr.rel (0) target = $region5
    $region4: #{tpu_custom_call.1} parent=1 // pred_region
      _
    $region5: #{tpu_custom_call.1} parent=1 // pred_fallthru
      _
    // Predicated region
    $region6: #{tpu_custom_call.1} parent=1 // pred_check
      _
    $region7: #{tpu_custom_call.1} parent=1 // pred_check_branch
      %14 = sbr.rel (0) target = $region9
    $region8: #{tpu_custom_call.1} parent=1 // pred_region
      _
    $region9: #{tpu_custom_call.1} parent=1 // pred_fallthru
      _
    // Predicated region
    $region10: #{tpu_custom_call.1} parent=1 // pred_check
      _
    $region11: #{tpu_custom_call.1} parent=1 // pred_check_branch
      %16 = sbr.rel (0) target = $region13
    $region12: #{tpu_custom_call.1} parent=1 // pred_region
      _
    $region13: #{tpu_custom_call.1} parent=1 // pred_fallthru
      _
    // Predicated region
    $region14: #{tpu_custom_call.1} parent=1 // pred_check
      _
    $region15: #{tpu_custom_call.1} parent=1 // pred_check_branch
      %18 = sbr.rel (0) target = $region17
    $region16: #{tpu_custom_call.1} parent=1 // pred_region
      _
    $region17: #{tpu_custom_call.1} parent=1 // pred_fallthru
      _
    // Predicated region
    $region18: #{tpu_custom_call.1} parent=1 // pred_check
      _
    $region19: #{tpu_custom_call.1} parent=1 // pred_check_branch
      %20 = sbr.rel (0) target = $region21
    $region20: #{tpu_custom_call.1} parent=1 // pred_region
      _
    $region21: #{tpu_custom_call.1} parent=1 // pred_fallthru
      _
    %v22 = vld [vmem:[%s0] sm:$0xf]
    %v23 = vld [vmem:[%s1] sm:$0xff]
    %v24 = vld [vmem:[%s1 + $0x8] sm:$0xff]
    %v25 = vld [vmem:[%s1 + $0x10] sm:$0xff]
    %v26 = vld [vmem:[%s1 + $0x18] sm:$0xff]
    %v27 = vld [vmem:[%s1 + $0x20] sm:$0xff]
    %v28 = vld [vmem:[%s1 + $0x28] sm:$0xff]
    %v29 = vld [vmem:[%s1 + $0x30] sm:$0xff]
    %v30 = vld [vmem:[%s1 + $0x38] sm:$0xff]
    %v31 = vld [vmem:[%s1 + $0x40] sm:$0xff]
    %v32 = vld [vmem:[%s1 + $0x48] sm:$0xff]
    %v33 = vld [vmem:[%s1 + $0x50] sm:$0xff]
    %v34 = vld [vmem:[%s1 + $0x58] sm:$0xff]
    %v35 = vld [vmem:[%s1 + $0x60] sm:$0xff]
    %v36 = vld [vmem:[%s1 + $0x68] sm:$0xff]
    %v37 = vld [vmem:[%s1 + $0x70] sm:$0xff]
    %v38 = vld [vmem:[%s1 + $0x78] sm:$0xff]
    %v39 = vld [vmem:[%s2] sm:$0xf]
    %v41 = vlaneseq
    %v42 = vshrl.u32 %v41, 7
    %v43 = vsub.s32 0, %v42
    %v44 = vrot.slane %v39, %v43
    %v45 = vlaneseq
    %v46 = vshrl.u32 %v45, 7
    %v47 = vsub.s32 1, %v46
    %v48 = vrot.slane %v39, %v47
    %v49 = vlaneseq
    %v50 = vshrl.u32 %v49, 7
    %v51 = vsub.s32 2, %v50
    %v52 = vrot.slane %v39, %v51
    %v53 = vlaneseq
    %v54 = vshrl.u32 %v53, 7
    %v55 = vsub.s32 3, %v54
    %v56 = vrot.slane %v39, %v55
    %v77 = vunpack.c.l.b16 %v23
    %v78 = vunpack.c.h.b16 %v23
    %v79 = vunpack.c.l.b16 %v24
    %v80 = vunpack.c.h.b16 %v24
    %v81 = vunpack.c.l.b16 %v25
    %v82 = vunpack.c.h.b16 %v25
    %v83 = vunpack.c.l.b16 %v26
    %v84 = vunpack.c.h.b16 %v26
    %v85 = vunpack.c.l.b16 %v27
    %v86 = vunpack.c.h.b16 %v27
    %v87 = vunpack.c.l.b16 %v28
    %v88 = vunpack.c.h.b16 %v28
    %v89 = vunpack.c.l.b16 %v29
    %v90 = vunpack.c.h.b16 %v29
    %v91 = vunpack.c.l.b16 %v30
    %v92 = vunpack.c.h.b16 %v30
    %v93 = vunpack.c.l.b16 %v31
    %v94 = vunpack.c.h.b16 %v31
    %v95 = vunpack.c.l.b16 %v32
    %v96 = vunpack.c.h.b16 %v32
    %v97 = vunpack.c.l.b16 %v33
    %v98 = vunpack.c.h.b16 %v33
    %v99 = vunpack.c.l.b16 %v34
    %v100 = vunpack.c.h.b16 %v34
    %v101 = vunpack.c.l.b16 %v35
    %v102 = vunpack.c.h.b16 %v35
    %v103 = vunpack.c.l.b16 %v36
    %v104 = vunpack.c.h.b16 %v36
    %v105 = vunpack.c.l.b16 %v37
    %v106 = vunpack.c.h.b16 %v37
    %v107 = vunpack.c.l.b16 %v38
    %v108 = vunpack.c.h.b16 %v38
    %v109 = vpack.c.b16 %v81, %v77
    %v110 = vpack.c.b16 %v82, %v78
    %v111 = vpack.c.b16 %v83, %v79
    %v112 = vpack.c.b16 %v84, %v80
    %v113 = vpack.c.b16 %v89, %v85
    %v114 = vpack.c.b16 %v90, %v86
    %v115 = vpack.c.b16 %v91, %v87
    %v116 = vpack.c.b16 %v92, %v88
    %v117 = vpack.c.b16 %v97, %v93
    %v118 = vpack.c.b16 %v98, %v94
    %v119 = vpack.c.b16 %v99, %v95
    %v120 = vpack.c.b16 %v100, %v96
    %v121 = vpack.c.b16 %v105, %v101
    %v122 = vpack.c.b16 %v106, %v102
    %v123 = vpack.c.b16 %v107, %v103
    %v124 = vpack.c.b16 %v108, %v104
    %vm141 = vcmask 523264
    %v143 = vsel %vm141, %v22, 0
    %145 = vmatprep.subr.bf16.mxu0 0
    %146 = vmatpush1.bf16.msra.mxu0 0
    %147 = vmatprep.subr.bf16.mxu0 0
    %148 = vmatpush1.bf16.msra.mxu0 0
    %149 = vmatprep.subr.bf16.mxu0 0
    %150 = vmatpush1.bf16.msra.mxu0 0
    %151 = vmatprep.subr.bf16.mxu0 0
    %152 = vmatpush1.bf16.msra.mxu0 0
    %153 = vmatprep.subr.bf16.mxu0 %v122
    %154 = vmatpush1.bf16.msra.mxu0 %v121
    %155 = vmatprep.subr.bf16.mxu0 %v118
    %156 = vmatpush1.bf16.msra.mxu0 %v117
    %157 = vmatprep.subr.bf16.mxu0 %v114
    %158 = vmatpush1.bf16.msra.mxu0 %v113
    %159 = vmatprep.subr.bf16.mxu0 %v110
    %160 = vmatpush1.bf16.msra.mxu0 %v109
    %161 = vmatprep.subr.bf16.mxu0 0
    %162 = vmatpush2.bf16.msra.mxu0 0
    %163 = vmatprep.subr.bf16.mxu0 0
    %164 = vmatpush2.bf16.msra.mxu0 0
    %165 = vmatprep.subr.bf16.mxu0 0
    %166 = vmatpush2.bf16.msra.mxu0 0
    %167 = vmatprep.subr.bf16.mxu0 0
    %168 = vmatpush2.bf16.msra.mxu0 0
    %169 = vmatprep.subr.bf16.mxu0 0
    %170 = vmatpush2.bf16.msra.mxu0 0
    %171 = vmatprep.subr.bf16.mxu0 0
    %172 = vmatpush2.bf16.msra.mxu0 0
    %173 = vmatprep.subr.bf16.mxu0 0
    %174 = vmatpush2.bf16.msra.mxu0 0
    %175 = vmatprep.subr.bf16.mxu0 0
    %176 = vmatpush2.bf16.msra.mxu0 0
    %177 = vmatprep.mubr.bf16.mxu0 0
    %178 = vmatmul.mubr.bf16.gmra.mxu0 %v143
    %v179 = vpop.f32.mrf.mxu0
    %v180 = vadd.f32 %v44, %v179
    %v181 = vpop.f32.mrf.mxu0
    %v182 = vadd.f32 %v48, %v181
    %v183 = vpop.f32.mrf.mxu0
    %v184 = vpop.f32.mrf.mxu0
    %185 = vdwg.mxu0
    %186 = vmatprep.subr.bf16.mxu0 0
    %187 = vmatpush1.bf16.msra.mxu0 0
    %188 = vmatprep.subr.bf16.mxu0 0
    %189 = vmatpush1.bf16.msra.mxu0 0
    %190 = vmatprep.subr.bf16.mxu0 0
    %191 = vmatpush1.bf16.msra.mxu0 0
    %192 = vmatprep.subr.bf16.mxu0 0
    %193 = vmatpush1.bf16.msra.mxu0 0
    %194 = vmatprep.subr.bf16.mxu0 %v124
    %195 = vmatpush1.bf16.msra.mxu0 %v123
    %196 = vmatprep.subr.bf16.mxu0 %v120
    %197 = vmatpush1.bf16.msra.mxu0 %v119
    %198 = vmatprep.subr.bf16.mxu0 %v116
    %199 = vmatpush1.bf16.msra.mxu0 %v115
    %200 = vmatprep.subr.bf16.mxu0 %v112
    %201 = vmatpush1.bf16.msra.mxu0 %v111
    %202 = vmatprep.subr.bf16.mxu0 0
    %203 = vmatpush2.bf16.msra.mxu0 0
    %204 = vmatprep.subr.bf16.mxu0 0
    %205 = vmatpush2.bf16.msra.mxu0 0
    %206 = vmatprep.subr.bf16.mxu0 0
    %207 = vmatpush2.bf16.msra.mxu0 0
    %208 = vmatprep.subr.bf16.mxu0 0
    %209 = vmatpush2.bf16.msra.mxu0 0
    %210 = vmatprep.subr.bf16.mxu0 0
    %211 = vmatpush2.bf16.msra.mxu0 0
    %212 = vmatprep.subr.bf16.mxu0 0
    %213 = vmatpush2.bf16.msra.mxu0 0
    %214 = vmatprep.subr.bf16.mxu0 0
    %215 = vmatpush2.bf16.msra.mxu0 0
    %216 = vmatprep.subr.bf16.mxu0 0
    %217 = vmatpush2.bf16.msra.mxu0 0
    %218 = vmatprep.mubr.bf16.mxu0 0
    %219 = vmatmul.mubr.bf16.gmra.mxu0 %v143
    %v220 = vpop.f32.mrf.mxu0
    %v221 = vadd.f32 %v52, %v220
    %v222 = vpop.f32.mrf.mxu0
    %v223 = vadd.f32 %v56, %v222
    %v224 = vpop.f32.mrf.mxu0
    %v225 = vpop.f32.mrf.mxu0
    %226 = vdwg.mxu0
    %v227 = vmul.f32 %v180, 0.01
    %v228 = vmul.f32 %v182, 0.01
    %v229 = vmul.f32 %v221, 0.01
    %v230 = vmul.f32 %v223, 0.01
    %v231 = vmax.f32 %v180, %v227
    %v232 = vmax.f32 %v182, %v228
    %v233 = vmax.f32 %v221, %v229
    %v234 = vmax.f32 %v223, %v230
    %v235 = vpack.c.bf16 %v231, %v231
    %v236 = vpack.c.bf16 %v232, %v232
    %v237 = vpack.c.bf16 %v233, %v233
    %v238 = vpack.c.bf16 %v234, %v234
    %v239 = vld [vmem:[%s3] sm:$0xff]
    %v240 = vld [vmem:[%s3 + $0x8] sm:$0xff]
    %v241 = vld [vmem:[%s3 + $0x10] sm:$0xff]
    %v242 = vld [vmem:[%s3 + $0x18] sm:$0xf]
    %v243 = vld [vmem:[%s3 + $0x1c] sm:$0xff]
    %v244 = vld [vmem:[%s3 + $0x24] sm:$0xff]
    %v245 = vld [vmem:[%s3 + $0x2c] sm:$0xff]
    %v246 = vld [vmem:[%s3 + $0x34] sm:$0xf]
    %v247 = vld [vmem:[%s3 + $0x38] sm:$0xff]
    %v248 = vld [vmem:[%s3 + $0x40] sm:$0xff]
    %v249 = vld [vmem:[%s3 + $0x48] sm:$0xff]
    %v250 = vld [vmem:[%s3 + $0x50] sm:$0xf]
    %v251 = vld [vmem:[%s3 + $0x54] sm:$0xff]
    %v252 = vld [vmem:[%s3 + $0x5c] sm:$0xff]
    %v253 = vld [vmem:[%s3 + $0x64] sm:$0xff]
    %v254 = vld [vmem:[%s3 + $0x6c] sm:$0xf]
    %v255 = vld [vmem:[%s3 + $0x70] sm:$0xff]
    %v256 = vld [vmem:[%s3 + $0x78] sm:$0xff]
    %v257 = vld [vmem:[%s3 + $0x80] sm:$0xff]
    %v258 = vld [vmem:[%s3 + $0x88] sm:$0xf]
    %v259 = vld [vmem:[%s3 + $0x8c] sm:$0xff]
    %v260 = vld [vmem:[%s3 + $0x94] sm:$0xff]
    %v261 = vld [vmem:[%s3 + $0x9c] sm:$0xff]
    %v262 = vld [vmem:[%s3 + $0xa4] sm:$0xf]
    %v263 = vld [vmem:[%s3 + $0xa8] sm:$0xff]
    %v264 = vld [vmem:[%s3 + $0xb0] sm:$0xff]
    %v265 = vld [vmem:[%s3 + $0xb8] sm:$0xff]
    %v266 = vld [vmem:[%s3 + $0xc0] sm:$0xf]
    %v267 = vld [vmem:[%s3 + $0xc4] sm:$0xff]
    %v268 = vld [vmem:[%s3 + $0xcc] sm:$0xff]
    %v269 = vld [vmem:[%s3 + $0xd4] sm:$0xff]
    %v270 = vld [vmem:[%s3 + $0xdc] sm:$0xf]
    %v271 = vld [vmem:[%s3 + $0xe0] sm:$0xff]
    %v272 = vld [vmem:[%s3 + $0xe8] sm:$0xff]
    %v273 = vld [vmem:[%s3 + $0xf0] sm:$0xff]
    %v274 = vld [vmem:[%s3 + $0xf8] sm:$0xf]
    %v275 = vld [vmem:[%s3 + $0xfc] sm:$0xff]
    %v276 = vld [vmem:[%s3 + $0x104] sm:$0xff]
    %v277 = vld [vmem:[%s3 + $0x10c] sm:$0xff]
    %v278 = vld [vmem:[%s3 + $0x114] sm:$0xf]
    %v279 = vld [vmem:[%s3 + $0x118] sm:$0xff]
    %v280 = vld [vmem:[%s3 + $0x120] sm:$0xff]
    %v281 = vld [vmem:[%s3 + $0x128] sm:$0xff]
    %v282 = vld [vmem:[%s3 + $0x130] sm:$0xf]
    %v283 = vld [vmem:[%s3 + $0x134] sm:$0xff]
    %v284 = vld [vmem:[%s3 + $0x13c] sm:$0xff]
    %v285 = vld [vmem:[%s3 + $0x144] sm:$0xff]
    %v286 = vld [vmem:[%s3 + $0x14c] sm:$0xf]
    %v287 = vld [vmem:[%s3 + $0x150] sm:$0xff]
    %v288 = vld [vmem:[%s3 + $0x158] sm:$0xff]
    %v289 = vld [vmem:[%s3 + $0x160] sm:$0xff]
    %v290 = vld [vmem:[%s3 + $0x168] sm:$0xf]
    %v291 = vld [vmem:[%s3 + $0x16c] sm:$0xff]
    %v292 = vld [vmem:[%s3 + $0x174] sm:$0xff]
    %v293 = vld [vmem:[%s3 + $0x17c] sm:$0xff]
    %v294 = vld [vmem:[%s3 + $0x184] sm:$0xf]
    %v295 = vld [vmem:[%s3 + $0x188] sm:$0xff]
    %v296 = vld [vmem:[%s3 + $0x190] sm:$0xff]
    %v297 = vld [vmem:[%s3 + $0x198] sm:$0xff]
    %v298 = vld [vmem:[%s3 + $0x1a0] sm:$0xf]
    %v299 = vld [vmem:[%s3 + $0x1a4] sm:$0xff]
    %v300 = vld [vmem:[%s3 + $0x1ac] sm:$0xff]
    %v301 = vld [vmem:[%s3 + $0x1b4] sm:$0xff]
    %v302 = vld [vmem:[%s3 + $0x1bc] sm:$0xf]
    %v303 = vld [vmem:[%s3 + $0x1c0] sm:$0xff]
    %v304 = vld [vmem:[%s3 + $0x1c8] sm:$0xff]
    %v305 = vld [vmem:[%s3 + $0x1d0] sm:$0xff]
    %v306 = vld [vmem:[%s3 + $0x1d8] sm:$0xf]
    %v307 = vld [vmem:[%s3 + $0x1dc] sm:$0xff]
    %v308 = vld [vmem:[%s3 + $0x1e4] sm:$0xff]
    %v309 = vld [vmem:[%s3 + $0x1ec] sm:$0xff]
    %v310 = vld [vmem:[%s3 + $0x1f4] sm:$0xf]
    %v311 = vld [vmem:[%s3 + $0x1f8] sm:$0xff]
    %v312 = vld [vmem:[%s3 + $0x200] sm:$0xff]
    %v313 = vld [vmem:[%s3 + $0x208] sm:$0xff]
    %v314 = vld [vmem:[%s3 + $0x210] sm:$0xf]
    %v315 = vld [vmem:[%s3 + $0x214] sm:$0xff]
    %v316 = vld [vmem:[%s3 + $0x21c] sm:$0xff]
    %v317 = vld [vmem:[%s3 + $0x224] sm:$0xff]
    %v318 = vld [vmem:[%s3 + $0x22c] sm:$0xf]
    %v319 = vld [vmem:[%s3 + $0x230] sm:$0xff]
    %v320 = vld [vmem:[%s3 + $0x238] sm:$0xff]
    %v321 = vld [vmem:[%s3 + $0x240] sm:$0xff]
    %v322 = vld [vmem:[%s3 + $0x248] sm:$0xf]
    %v323 = vld [vmem:[%s3 + $0x24c] sm:$0xff]
    %v324 = vld [vmem:[%s3 + $0x254] sm:$0xff]
    %v325 = vld [vmem:[%s3 + $0x25c] sm:$0xff]
    %v326 = vld [vmem:[%s3 + $0x264] sm:$0xf]
    %v327 = vld [vmem:[%s3 + $0x268] sm:$0xff]
    %v328 = vld [vmem:[%s3 + $0x270] sm:$0xff]
    %v329 = vld [vmem:[%s3 + $0x278] sm:$0xff]
    %v330 = vld [vmem:[%s3 + $0x280] sm:$0xf]
    %v331 = vld [vmem:[%s3 + $0x284] sm:$0xff]
    %v332 = vld [vmem:[%s3 + $0x28c] sm:$0xff]
    %v333 = vld [vmem:[%s3 + $0x294] sm:$0xff]
    %v334 = vld [vmem:[%s3 + $0x29c] sm:$0xf]
    %v335 = vld [vmem:[%s3 + $0x2a0] sm:$0xff]
    %v336 = vld [vmem:[%s3 + $0x2a8] sm:$0xff]
    %v337 = vld [vmem:[%s3 + $0x2b0] sm:$0xff]
    %v338 = vld [vmem:[%s3 + $0x2b8] sm:$0xf]
    %v339 = vld [vmem:[%s3 + $0x2bc] sm:$0xff]
    %v340 = vld [vmem:[%s3 + $0x2c4] sm:$0xff]
    %v341 = vld [vmem:[%s3 + $0x2cc] sm:$0xff]
    %v342 = vld [vmem:[%s3 + $0x2d4] sm:$0xf]
    %v343 = vld [vmem:[%s3 + $0x2d8] sm:$0xff]
    %v344 = vld [vmem:[%s3 + $0x2e0] sm:$0xff]
    %v345 = vld [vmem:[%s3 + $0x2e8] sm:$0xff]
    %v346 = vld [vmem:[%s3 + $0x2f0] sm:$0xf]
    %v347 = vld [vmem:[%s3 + $0x2f4] sm:$0xff]
    %v348 = vld [vmem:[%s3 + $0x2fc] sm:$0xff]
    %v349 = vld [vmem:[%s3 + $0x304] sm:$0xff]
    %v350 = vld [vmem:[%s3 + $0x30c] sm:$0xf]
    %v351 = vld [vmem:[%s3 + $0x310] sm:$0xff]
    %v352 = vld [vmem:[%s3 + $0x318] sm:$0xff]
    %v353 = vld [vmem:[%s3 + $0x320] sm:$0xff]
    %v354 = vld [vmem:[%s3 + $0x328] sm:$0xf]
    %v355 = vld [vmem:[%s3 + $0x32c] sm:$0xff]
    %v356 = vld [vmem:[%s3 + $0x334] sm:$0xff]
    %v357 = vld [vmem:[%s3 + $0x33c] sm:$0xff]
    %v358 = vld [vmem:[%s3 + $0x344] sm:$0xf]
    %v359 = vld [vmem:[%s3 + $0x348] sm:$0xff]
    %v360 = vld [vmem:[%s3 + $0x350] sm:$0xff]
    %v361 = vld [vmem:[%s3 + $0x358] sm:$0xff]
    %v362 = vld [vmem:[%s3 + $0x360] sm:$0xf]
    %v363 = vld [vmem:[%s3 + $0x364] sm:$0xff]
    %v364 = vld [vmem:[%s3 + $0x36c] sm:$0xff]
    %v365 = vld [vmem:[%s3 + $0x374] sm:$0xff]
    %v366 = vld [vmem:[%s3 + $0x37c] sm:$0xf]
    %v367 = vld [vmem:[%s3 + $0x380] sm:$0xff]
    %v368 = vld [vmem:[%s3 + $0x388] sm:$0xff]
    %v369 = vld [vmem:[%s3 + $0x390] sm:$0xff]
    %v370 = vld [vmem:[%s3 + $0x398] sm:$0xf]
    %v371 = vld [vmem:[%s3 + $0x39c] sm:$0xff]
    %v372 = vld [vmem:[%s3 + $0x3a4] sm:$0xff]
    %v373 = vld [vmem:[%s3 + $0x3ac] sm:$0xff]
    %v374 = vld [vmem:[%s3 + $0x3b4] sm:$0xf]
    %v375 = vld [vmem:[%s3 + $0x3b8] sm:$0xff]
    %v376 = vld [vmem:[%s3 + $0x3c0] sm:$0xff]
    %v377 = vld [vmem:[%s3 + $0x3c8] sm:$0xff]
    %v378 = vld [vmem:[%s3 + $0x3d0] sm:$0xf]
    %v379 = vld [vmem:[%s3 + $0x3d4] sm:$0xff]
    %v380 = vld [vmem:[%s3 + $0x3dc] sm:$0xff]
    %v381 = vld [vmem:[%s3 + $0x3e4] sm:$0xff]
    %v382 = vld [vmem:[%s3 + $0x3ec] sm:$0xf]
    %v383 = vld [vmem:[%s3 + $0x3f0] sm:$0xff]
    %v384 = vld [vmem:[%s3 + $0x3f8] sm:$0xff]
    %v385 = vld [vmem:[%s3 + $0x400] sm:$0xff]
    %v386 = vld [vmem:[%s3 + $0x408] sm:$0xf]
    %v387 = vld [vmem:[%s3 + $0x40c] sm:$0xff]
    %v388 = vld [vmem:[%s3 + $0x414] sm:$0xff]
    %v389 = vld [vmem:[%s3 + $0x41c] sm:$0xff]
    %v390 = vld [vmem:[%s3 + $0x424] sm:$0xf]
    %v391 = vld [vmem:[%s3 + $0x428] sm:$0xff]
    %v392 = vld [vmem:[%s3 + $0x430] sm:$0xff]
    %v393 = vld [vmem:[%s3 + $0x438] sm:$0xff]
    %v394 = vld [vmem:[%s3 + $0x440] sm:$0xf]
    %v395 = vld [vmem:[%s3 + $0x444] sm:$0xff]
    %v396 = vld [vmem:[%s3 + $0x44c] sm:$0xff]
    %v397 = vld [vmem:[%s3 + $0x454] sm:$0xff]
    %v398 = vld [vmem:[%s3 + $0x45c] sm:$0xf]
    %v399 = vld [vmem:[%s3 + $0x460] sm:$0xff]
    %v400 = vld [vmem:[%s3 + $0x468] sm:$0xff]
    %v401 = vld [vmem:[%s3 + $0x470] sm:$0xff]
    %v402 = vld [vmem:[%s3 + $0x478] sm:$0xf]
    %v403 = vld [vmem:[%s3 + $0x47c] sm:$0xff]
    %v404 = vld [vmem:[%s3 + $0x484] sm:$0xff]
    %v405 = vld [vmem:[%s3 + $0x48c] sm:$0xff]
    %v406 = vld [vmem:[%s3 + $0x494] sm:$0xf]
    %v407 = vld [vmem:[%s3 + $0x498] sm:$0xff]
    %v408 = vld [vmem:[%s3 + $0x4a0] sm:$0xff]
    %v409 = vld [vmem:[%s3 + $0x4a8] sm:$0xff]
    %v410 = vld [vmem:[%s3 + $0x4b0] sm:$0xf]
    %v411 = vld [vmem:[%s3 + $0x4b4] sm:$0xff]
    %v412 = vld [vmem:[%s3 + $0x4bc] sm:$0xff]
    %v413 = vld [vmem:[%s3 + $0x4c4] sm:$0xff]
    %v414 = vld [vmem:[%s3 + $0x4cc] sm:$0xf]
    %v415 = vld [vmem:[%s3 + $0x4d0] sm:$0xff]
    %v416 = vld [vmem:[%s3 + $0x4d8] sm:$0xff]
    %v417 = vld [vmem:[%s3 + $0x4e0] sm:$0xff]
    %v418 = vld [vmem:[%s3 + $0x4e8] sm:$0xf]
    %v419 = vld [vmem:[%s3 + $0x4ec] sm:$0xff]
    %v420 = vld [vmem:[%s3 + $0x4f4] sm:$0xff]
    %v421 = vld [vmem:[%s3 + $0x4fc] sm:$0xff]
    %v422 = vld [vmem:[%s3 + $0x504] sm:$0xf]
    %v423 = vld [vmem:[%s3 + $0x508] sm:$0xff]
    %v424 = vld [vmem:[%s3 + $0x510] sm:$0xff]
    %v425 = vld [vmem:[%s3 + $0x518] sm:$0xff]
    %v426 = vld [vmem:[%s3 + $0x520] sm:$0xf]
    %v427 = vld [vmem:[%s3 + $0x524] sm:$0xff]
    %v428 = vld [vmem:[%s3 + $0x52c] sm:$0xff]
    %v429 = vld [vmem:[%s3 + $0x534] sm:$0xff]
    %v430 = vld [vmem:[%s3 + $0x53c] sm:$0xf]
    %v431 = vld [vmem:[%s3 + $0x540] sm:$0xff]
    %v432 = vld [vmem:[%s3 + $0x548] sm:$0xff]
    %v433 = vld [vmem:[%s3 + $0x550] sm:$0xff]
    %v434 = vld [vmem:[%s3 + $0x558] sm:$0xf]
    %v435 = vld [vmem:[%s3 + $0x55c] sm:$0xff]
    %v436 = vld [vmem:[%s3 + $0x564] sm:$0xff]
    %v437 = vld [vmem:[%s3 + $0x56c] sm:$0xff]
    %v438 = vld [vmem:[%s3 + $0x574] sm:$0xf]
    %v439 = vld [vmem:[%s3 + $0x578] sm:$0xff]
    %v440 = vld [vmem:[%s3 + $0x580] sm:$0xff]
    %v441 = vld [vmem:[%s3 + $0x588] sm:$0xff]
    %v442 = vld [vmem:[%s3 + $0x590] sm:$0xf]
    %v443 = vld [vmem:[%s3 + $0x594] sm:$0xff]
    %v444 = vld [vmem:[%s3 + $0x59c] sm:$0xff]
    %v445 = vld [vmem:[%s3 + $0x5a4] sm:$0xff]
    %v446 = vld [vmem:[%s3 + $0x5ac] sm:$0xf]
    %v447 = vld [vmem:[%s3 + $0x5b0] sm:$0xff]
    %v448 = vld [vmem:[%s3 + $0x5b8] sm:$0xff]
    %v449 = vld [vmem:[%s3 + $0x5c0] sm:$0xff]
    %v450 = vld [vmem:[%s3 + $0x5c8] sm:$0xf]
    %v451 = vld [vmem:[%s3 + $0x5cc] sm:$0xff]
    %v452 = vld [vmem:[%s3 + $0x5d4] sm:$0xff]
    %v453 = vld [vmem:[%s3 + $0x5dc] sm:$0xff]
    %v454 = vld [vmem:[%s3 + $0x5e4] sm:$0xf]
    %v455 = vld [vmem:[%s3 + $0x5e8] sm:$0xff]
    %v456 = vld [vmem:[%s3 + $0x5f0] sm:$0xff]
    %v457 = vld [vmem:[%s3 + $0x5f8] sm:$0xff]
    %v458 = vld [vmem:[%s3 + $0x600] sm:$0xf]
    %v459 = vld [vmem:[%s3 + $0x604] sm:$0xff]
    %v460 = vld [vmem:[%s3 + $0x60c] sm:$0xff]
    %v461 = vld [vmem:[%s3 + $0x614] sm:$0xff]
    %v462 = vld [vmem:[%s3 + $0x61c] sm:$0xf]
    %v463 = vld [vmem:[%s3 + $0x620] sm:$0xff]
    %v464 = vld [vmem:[%s3 + $0x628] sm:$0xff]
    %v465 = vld [vmem:[%s3 + $0x630] sm:$0xff]
    %v466 = vld [vmem:[%s3 + $0x638] sm:$0xf]
    %v467 = vld [vmem:[%s3 + $0x63c] sm:$0xff]
    %v468 = vld [vmem:[%s3 + $0x644] sm:$0xff]
    %v469 = vld [vmem:[%s3 + $0x64c] sm:$0xff]
    %v470 = vld [vmem:[%s3 + $0x654] sm:$0xf]
    %v471 = vld [vmem:[%s3 + $0x658] sm:$0xff]
    %v472 = vld [vmem:[%s3 + $0x660] sm:$0xff]
    %v473 = vld [vmem:[%s3 + $0x668] sm:$0xff]
    %v474 = vld [vmem:[%s3 + $0x670] sm:$0xf]
    %v475 = vld [vmem:[%s3 + $0x674] sm:$0xff]
    %v476 = vld [vmem:[%s3 + $0x67c] sm:$0xff]
    %v477 = vld [vmem:[%s3 + $0x684] sm:$0xff]
    %v478 = vld [vmem:[%s3 + $0x68c] sm:$0xf]
    %v479 = vld [vmem:[%s3 + $0x690] sm:$0xff]
    %v480 = vld [vmem:[%s3 + $0x698] sm:$0xff]
    %v481 = vld [vmem:[%s3 + $0x6a0] sm:$0xff]
    %v482 = vld [vmem:[%s3 + $0x6a8] sm:$0xf]
    %v483 = vld [vmem:[%s3 + $0x6ac] sm:$0xff]
    %v484 = vld [vmem:[%s3 + $0x6b4] sm:$0xff]
    %v485 = vld [vmem:[%s3 + $0x6bc] sm:$0xff]
    %v486 = vld [vmem:[%s3 + $0x6c4] sm:$0xf]
    %v487 = vld [vmem:[%s3 + $0x6c8] sm:$0xff]
    %v488 = vld [vmem:[%s3 + $0x6d0] sm:$0xff]
    %v489 = vld [vmem:[%s3 + $0x6d8] sm:$0xff]
    %v490 = vld [vmem:[%s3 + $0x6e0] sm:$0xf]
    %v491 = vld [vmem:[%s3 + $0x6e4] sm:$0xff]
    %v492 = vld [vmem:[%s3 + $0x6ec] sm:$0xff]
    %v493 = vld [vmem:[%s3 + $0x6f4] sm:$0xff]
    %v494 = vld [vmem:[%s3 + $0x6fc] sm:$0xf]
    %v495 = vld [vmem:[%s4] sm:$0x7f]
    %v497 = vlaneseq
    %v498 = vshrl.u32 %v497, 7
    %v499 = vsub.s32 0, %v498
    %v500 = vrot.slane %v495, %v499
    %v501 = vlaneseq
    %v502 = vshrl.u32 %v501, 7
    %v503 = vsub.s32 1, %v502
    %v504 = vrot.slane %v495, %v503
    %v505 = vlaneseq
    %v506 = vshrl.u32 %v505, 7
    %v507 = vsub.s32 2, %v506
    %v508 = vrot.slane %v495, %v507
    %v509 = vlaneseq
    %v510 = vshrl.u32 %v509, 7
    %v511 = vsub.s32 3, %v510
    %v512 = vrot.slane %v495, %v511
    %v513 = vlaneseq
    %v514 = vshrl.u32 %v513, 7
    %v515 = vsub.s32 4, %v514
    %v516 = vrot.slane %v495, %v515
    %v517 = vlaneseq
    %v518 = vshrl.u32 %v517, 7
    %v519 = vsub.s32 5, %v518
    %v520 = vrot.slane %v495, %v519
    %v521 = vlaneseq
    %v522 = vshrl.u32 %v521, 7
    %v523 = vsub.s32 6, %v522
    %v524 = vrot.slane %v495, %v523
    %v788 = vunpack.c.l.b16 %v239
    %v789 = vunpack.c.h.b16 %v239
    %v790 = vunpack.c.l.b16 %v240
    %v791 = vunpack.c.h.b16 %v240
    %v792 = vunpack.c.l.b16 %v241
    %v793 = vunpack.c.h.b16 %v241
    %v794 = vunpack.c.l.b16 %v242
    %v795 = vunpack.c.l.b16 %v243
    %v796 = vunpack.c.h.b16 %v243
    %v797 = vunpack.c.l.b16 %v244
    %v798 = vunpack.c.h.b16 %v244
    %v799 = vunpack.c.l.b16 %v245
    %v800 = vunpack.c.h.b16 %v245
    %v801 = vunpack.c.l.b16 %v246
    %v802 = vunpack.c.l.b16 %v247
    %v803 = vunpack.c.h.b16 %v247
    %v804 = vunpack.c.l.b16 %v248
    %v805 = vunpack.c.h.b16 %v248
    %v806 = vunpack.c.l.b16 %v249
    %v807 = vunpack.c.h.b16 %v249
    %v808 = vunpack.c.l.b16 %v250
    %v809 = vunpack.c.l.b16 %v251
    %v810 = vunpack.c.h.b16 %v251
    %v811 = vunpack.c.l.b16 %v252
    %v812 = vunpack.c.h.b16 %v252
    %v813 = vunpack.c.l.b16 %v253
    %v814 = vunpack.c.h.b16 %v253
    %v815 = vunpack.c.l.b16 %v254
    %v816 = vunpack.c.l.b16 %v255
    %v817 = vunpack.c.h.b16 %v255
    %v818 = vunpack.c.l.b16 %v256
    %v819 = vunpack.c.h.b16 %v256
    %v820 = vunpack.c.l.b16 %v257
    %v821 = vunpack.c.h.b16 %v257
    %v822 = vunpack.c.l.b16 %v258
    %v823 = vunpack.c.l.b16 %v259
    %v824 = vunpack.c.h.b16 %v259
    %v825 = vunpack.c.l.b16 %v260
    %v826 = vunpack.c.h.b16 %v260
    %v827 = vunpack.c.l.b16 %v261
    %v828 = vunpack.c.h.b16 %v261
    %v829 = vunpack.c.l.b16 %v262
    %v830 = vunpack.c.l.b16 %v263
    %v831 = vunpack.c.h.b16 %v263
    %v832 = vunpack.c.l.b16 %v264
    %v833 = vunpack.c.h.b16 %v264
    %v834 = vunpack.c.l.b16 %v265
    %v835 = vunpack.c.h.b16 %v265
    %v836 = vunpack.c.l.b16 %v266
    %v837 = vunpack.c.l.b16 %v267
    %v838 = vunpack.c.h.b16 %v267
    %v839 = vunpack.c.l.b16 %v268
    %v840 = vunpack.c.h.b16 %v268
    %v841 = vunpack.c.l.b16 %v269
    %v842 = vunpack.c.h.b16 %v269
    %v843 = vunpack.c.l.b16 %v270
    %v844 = vunpack.c.l.b16 %v271
    %v845 = vunpack.c.h.b16 %v271
    %v846 = vunpack.c.l.b16 %v272
    %v847 = vunpack.c.h.b16 %v272
    %v848 = vunpack.c.l.b16 %v273
    %v849 = vunpack.c.h.b16 %v273
    %v850 = vunpack.c.l.b16 %v274
    %v851 = vunpack.c.l.b16 %v275
    %v852 = vunpack.c.h.b16 %v275
    %v853 = vunpack.c.l.b16 %v276
    %v854 = vunpack.c.h.b16 %v276
    %v855 = vunpack.c.l.b16 %v277
    %v856 = vunpack.c.h.b16 %v277
    %v857 = vunpack.c.l.b16 %v278
    %v858 = vunpack.c.l.b16 %v279
    %v859 = vunpack.c.h.b16 %v279
    %v860 = vunpack.c.l.b16 %v280
    %v861 = vunpack.c.h.b16 %v280
    %v862 = vunpack.c.l.b16 %v281
    %v863 = vunpack.c.h.b16 %v281
    %v864 = vunpack.c.l.b16 %v282
    %v865 = vunpack.c.l.b16 %v283
    %v866 = vunpack.c.h.b16 %v283
    %v867 = vunpack.c.l.b16 %v284
    %v868 = vunpack.c.h.b16 %v284
    %v869 = vunpack.c.l.b16 %v285
    %v870 = vunpack.c.h.b16 %v285
    %v871 = vunpack.c.l.b16 %v286
    %v872 = vunpack.c.l.b16 %v287
    %v873 = vunpack.c.h.b16 %v287
    %v874 = vunpack.c.l.b16 %v288
    %v875 = vunpack.c.h.b16 %v288
    %v876 = vunpack.c.l.b16 %v289
    %v877 = vunpack.c.h.b16 %v289
    %v878 = vunpack.c.l.b16 %v290
    %v879 = vunpack.c.l.b16 %v291
    %v880 = vunpack.c.h.b16 %v291
    %v881 = vunpack.c.l.b16 %v292
    %v882 = vunpack.c.h.b16 %v292
    %v883 = vunpack.c.l.b16 %v293
    %v884 = vunpack.c.h.b16 %v293
    %v885 = vunpack.c.l.b16 %v294
    %v886 = vunpack.c.l.b16 %v295
    %v887 = vunpack.c.h.b16 %v295
    %v888 = vunpack.c.l.b16 %v296
    %v889 = vunpack.c.h.b16 %v296
    %v890 = vunpack.c.l.b16 %v297
    %v891 = vunpack.c.h.b16 %v297
    %v892 = vunpack.c.l.b16 %v298
    %v893 = vunpack.c.l.b16 %v299
    %v894 = vunpack.c.h.b16 %v299
    %v895 = vunpack.c.l.b16 %v300
    %v896 = vunpack.c.h.b16 %v300
    %v897 = vunpack.c.l.b16 %v301
    %v898 = vunpack.c.h.b16 %v301
    %v899 = vunpack.c.l.b16 %v302
    %v900 = vunpack.c.l.b16 %v303
    %v901 = vunpack.c.h.b16 %v303
    %v902 = vunpack.c.l.b16 %v304
    %v903 = vunpack.c.h.b16 %v304
    %v904 = vunpack.c.l.b16 %v305
    %v905 = vunpack.c.h.b16 %v305
    %v906 = vunpack.c.l.b16 %v306
    %v907 = vunpack.c.l.b16 %v307
    %v908 = vunpack.c.h.b16 %v307
    %v909 = vunpack.c.l.b16 %v308
    %v910 = vunpack.c.h.b16 %v308
    %v911 = vunpack.c.l.b16 %v309
    %v912 = vunpack.c.h.b16 %v309
    %v913 = vunpack.c.l.b16 %v310
    %v914 = vunpack.c.l.b16 %v311
    %v915 = vunpack.c.h.b16 %v311
    %v916 = vunpack.c.l.b16 %v312
    %v917 = vunpack.c.h.b16 %v312
    %v918 = vunpack.c.l.b16 %v313
    %v919 = vunpack.c.h.b16 %v313
    %v920 = vunpack.c.l.b16 %v314
    %v921 = vunpack.c.l.b16 %v315
    %v922 = vunpack.c.h.b16 %v315
    %v923 = vunpack.c.l.b16 %v316
    %v924 = vunpack.c.h.b16 %v316
    %v925 = vunpack.c.l.b16 %v317
    %v926 = vunpack.c.h.b16 %v317
    %v927 = vunpack.c.l.b16 %v318
    %v928 = vunpack.c.l.b16 %v319
    %v929 = vunpack.c.h.b16 %v319
    %v930 = vunpack.c.l.b16 %v320
    %v931 = vunpack.c.h.b16 %v320
    %v932 = vunpack.c.l.b16 %v321
    %v933 = vunpack.c.h.b16 %v321
    %v934 = vunpack.c.l.b16 %v322
    %v935 = vunpack.c.l.b16 %v323
    %v936 = vunpack.c.h.b16 %v323
    %v937 = vunpack.c.l.b16 %v324
    %v938 = vunpack.c.h.b16 %v324
    %v939 = vunpack.c.l.b16 %v325
    %v940 = vunpack.c.h.b16 %v325
    %v941 = vunpack.c.l.b16 %v326
    %v942 = vunpack.c.l.b16 %v327
    %v943 = vunpack.c.h.b16 %v327
    %v944 = vunpack.c.l.b16 %v328
    %v945 = vunpack.c.h.b16 %v328
    %v946 = vunpack.c.l.b16 %v329
    %v947 = vunpack.c.h.b16 %v329
    %v948 = vunpack.c.l.b16 %v330
    %v949 = vunpack.c.l.b16 %v331
    %v950 = vunpack.c.h.b16 %v331
    %v951 = vunpack.c.l.b16 %v332
    %v952 = vunpack.c.h.b16 %v332
    %v953 = vunpack.c.l.b16 %v333
    %v954 = vunpack.c.h.b16 %v333
    %v955 = vunpack.c.l.b16 %v334
    %v956 = vunpack.c.l.b16 %v335
    %v957 = vunpack.c.h.b16 %v335
    %v958 = vunpack.c.l.b16 %v336
    %v959 = vunpack.c.h.b16 %v336
    %v960 = vunpack.c.l.b16 %v337
    %v961 = vunpack.c.h.b16 %v337
    %v962 = vunpack.c.l.b16 %v338
    %v963 = vunpack.c.l.b16 %v339
    %v964 = vunpack.c.h.b16 %v339
    %v965 = vunpack.c.l.b16 %v340
    %v966 = vunpack.c.h.b16 %v340
    %v967 = vunpack.c.l.b16 %v341
    %v968 = vunpack.c.h.b16 %v341
    %v969 = vunpack.c.l.b16 %v342
    %v970 = vunpack.c.l.b16 %v343
    %v971 = vunpack.c.h.b16 %v343
    %v972 = vunpack.c.l.b16 %v344
    %v973 = vunpack.c.h.b16 %v344
    %v974 = vunpack.c.l.b16 %v345
    %v975 = vunpack.c.h.b16 %v345
    %v976 = vunpack.c.l.b16 %v346
    %v977 = vunpack.c.l.b16 %v347
    %v978 = vunpack.c.h.b16 %v347
    %v979 = vunpack.c.l.b16 %v348
    %v980 = vunpack.c.h.b16 %v348
    %v981 = vunpack.c.l.b16 %v349
    %v982 = vunpack.c.h.b16 %v349
    %v983 = vunpack.c.l.b16 %v350
    %v984 = vunpack.c.l.b16 %v351
    %v985 = vunpack.c.h.b16 %v351
    %v986 = vunpack.c.l.b16 %v352
    %v987 = vunpack.c.h.b16 %v352
    %v988 = vunpack.c.l.b16 %v353
    %v989 = vunpack.c.h.b16 %v353
    %v990 = vunpack.c.l.b16 %v354
    %v991 = vunpack.c.l.b16 %v355
    %v992 = vunpack.c.h.b16 %v355
    %v993 = vunpack.c.l.b16 %v356
    %v994 = vunpack.c.h.b16 %v356
    %v995 = vunpack.c.l.b16 %v357
    %v996 = vunpack.c.h.b16 %v357
    %v997 = vunpack.c.l.b16 %v358
    %v998 = vunpack.c.l.b16 %v359
    %v999 = vunpack.c.h.b16 %v359
    %v1000 = vunpack.c.l.b16 %v360
    %v1001 = vunpack.c.h.b16 %v360
    %v1002 = vunpack.c.l.b16 %v361
    %v1003 = vunpack.c.h.b16 %v361
    %v1004 = vunpack.c.l.b16 %v362
    %v1005 = vunpack.c.l.b16 %v363
    %v1006 = vunpack.c.h.b16 %v363
    %v1007 = vunpack.c.l.b16 %v364
    %v1008 = vunpack.c.h.b16 %v364
    %v1009 = vunpack.c.l.b16 %v365
    %v1010 = vunpack.c.h.b16 %v365
    %v1011 = vunpack.c.l.b16 %v366
    %v1012 = vunpack.c.l.b16 %v367
    %v1013 = vunpack.c.h.b16 %v367
    %v1014 = vunpack.c.l.b16 %v368
    %v1015 = vunpack.c.h.b16 %v368
    %v1016 = vunpack.c.l.b16 %v369
    %v1017 = vunpack.c.h.b16 %v369
    %v1018 = vunpack.c.l.b16 %v370
    %v1019 = vunpack.c.l.b16 %v371
    %v1020 = vunpack.c.h.b16 %v371
    %v1021 = vunpack.c.l.b16 %v372
    %v1022 = vunpack.c.h.b16 %v372
    %v1023 = vunpack.c.l.b16 %v373
    %v1024 = vunpack.c.h.b16 %v373
    %v1025 = vunpack.c.l.b16 %v374
    %v1026 = vunpack.c.l.b16 %v375
    %v1027 = vunpack.c.h.b16 %v375
    %v1028 = vunpack.c.l.b16 %v376
    %v1029 = vunpack.c.h.b16 %v376
    %v1030 = vunpack.c.l.b16 %v377
    %v1031 = vunpack.c.h.b16 %v377
    %v1032 = vunpack.c.l.b16 %v378
    %v1033 = vunpack.c.l.b16 %v379
    %v1034 = vunpack.c.h.b16 %v379
    %v1035 = vunpack.c.l.b16 %v380
    %v1036 = vunpack.c.h.b16 %v380
    %v1037 = vunpack.c.l.b16 %v381
    %v1038 = vunpack.c.h.b16 %v381
    %v1039 = vunpack.c.l.b16 %v382
    %v1040 = vunpack.c.l.b16 %v383
    %v1041 = vunpack.c.h.b16 %v383
    %v1042 = vunpack.c.l.b16 %v384
    %v1043 = vunpack.c.h.b16 %v384
    %v1044 = vunpack.c.l.b16 %v385
    %v1045 = vunpack.c.h.b16 %v385
    %v1046 = vunpack.c.l.b16 %v386
    %v1047 = vunpack.c.l.b16 %v387
    %v1048 = vunpack.c.h.b16 %v387
    %v1049 = vunpack.c.l.b16 %v388
    %v1050 = vunpack.c.h.b16 %v388
    %v1051 = vunpack.c.l.b16 %v389
    %v1052 = vunpack.c.h.b16 %v389
    %v1053 = vunpack.c.l.b16 %v390
    %v1054 = vunpack.c.l.b16 %v391
    %v1055 = vunpack.c.h.b16 %v391
    %v1056 = vunpack.c.l.b16 %v392
    %v1057 = vunpack.c.h.b16 %v392
    %v1058 = vunpack.c.l.b16 %v393
    %v1059 = vunpack.c.h.b16 %v393
    %v1060 = vunpack.c.l.b16 %v394
    %v1061 = vunpack.c.l.b16 %v395
    %v1062 = vunpack.c.h.b16 %v395
    %v1063 = vunpack.c.l.b16 %v396
    %v1064 = vunpack.c.h.b16 %v396
    %v1065 = vunpack.c.l.b16 %v397
    %v1066 = vunpack.c.h.b16 %v397
    %v1067 = vunpack.c.l.b16 %v398
    %v1068 = vunpack.c.l.b16 %v399
    %v1069 = vunpack.c.h.b16 %v399
    %v1070 = vunpack.c.l.b16 %v400
    %v1071 = vunpack.c.h.b16 %v400
    %v1072 = vunpack.c.l.b16 %v401
    %v1073 = vunpack.c.h.b16 %v401
    %v1074 = vunpack.c.l.b16 %v402
    %v1075 = vunpack.c.l.b16 %v403
    %v1076 = vunpack.c.h.b16 %v403
    %v1077 = vunpack.c.l.b16 %v404
    %v1078 = vunpack.c.h.b16 %v404
    %v1079 = vunpack.c.l.b16 %v405
    %v1080 = vunpack.c.h.b16 %v405
    %v1081 = vunpack.c.l.b16 %v406
    %v1082 = vunpack.c.l.b16 %v407
    %v1083 = vunpack.c.h.b16 %v407
    %v1084 = vunpack.c.l.b16 %v408
    %v1085 = vunpack.c.h.b16 %v408
    %v1086 = vunpack.c.l.b16 %v409
    %v1087 = vunpack.c.h.b16 %v409
    %v1088 = vunpack.c.l.b16 %v410
    %v1089 = vunpack.c.l.b16 %v411
    %v1090 = vunpack.c.h.b16 %v411
    %v1091 = vunpack.c.l.b16 %v412
    %v1092 = vunpack.c.h.b16 %v412
    %v1093 = vunpack.c.l.b16 %v413
    %v1094 = vunpack.c.h.b16 %v413
    %v1095 = vunpack.c.l.b16 %v414
    %v1096 = vunpack.c.l.b16 %v415
    %v1097 = vunpack.c.h.b16 %v415
    %v1098 = vunpack.c.l.b16 %v416
    %v1099 = vunpack.c.h.b16 %v416
    %v1100 = vunpack.c.l.b16 %v417
    %v1101 = vunpack.c.h.b16 %v417
    %v1102 = vunpack.c.l.b16 %v418
    %v1103 = vunpack.c.l.b16 %v419
    %v1104 = vunpack.c.h.b16 %v419
    %v1105 = vunpack.c.l.b16 %v420
    %v1106 = vunpack.c.h.b16 %v420
    %v1107 = vunpack.c.l.b16 %v421
    %v1108 = vunpack.c.h.b16 %v421
    %v1109 = vunpack.c.l.b16 %v422
    %v1110 = vunpack.c.l.b16 %v423
    %v1111 = vunpack.c.h.b16 %v423
    %v1112 = vunpack.c.l.b16 %v424
    %v1113 = vunpack.c.h.b16 %v424
    %v1114 = vunpack.c.l.b16 %v425
    %v1115 = vunpack.c.h.b16 %v425
    %v1116 = vunpack.c.l.b16 %v426
    %v1117 = vunpack.c.l.b16 %v427
    %v1118 = vunpack.c.h.b16 %v427
    %v1119 = vunpack.c.l.b16 %v428
    %v1120 = vunpack.c.h.b16 %v428
    %v1121 = vunpack.c.l.b16 %v429
    %v1122 = vunpack.c.h.b16 %v429
    %v1123 = vunpack.c.l.b16 %v430
    %v1124 = vunpack.c.l.b16 %v431
    %v1125 = vunpack.c.h.b16 %v431
    %v1126 = vunpack.c.l.b16 %v432
    %v1127 = vunpack.c.h.b16 %v432
    %v1128 = vunpack.c.l.b16 %v433
    %v1129 = vunpack.c.h.b16 %v433
    %v1130 = vunpack.c.l.b16 %v434
    %v1131 = vunpack.c.l.b16 %v435
    %v1132 = vunpack.c.h.b16 %v435
    %v1133 = vunpack.c.l.b16 %v436
    %v1134 = vunpack.c.h.b16 %v436
    %v1135 = vunpack.c.l.b16 %v437
    %v1136 = vunpack.c.h.b16 %v437
    %v1137 = vunpack.c.l.b16 %v438
    %v1138 = vunpack.c.l.b16 %v439
    %v1139 = vunpack.c.h.b16 %v439
    %v1140 = vunpack.c.l.b16 %v440
    %v1141 = vunpack.c.h.b16 %v440
    %v1142 = vunpack.c.l.b16 %v441
    %v1143 = vunpack.c.h.b16 %v441
    %v1144 = vunpack.c.l.b16 %v442
    %v1145 = vunpack.c.l.b16 %v443
    %v1146 = vunpack.c.h.b16 %v443
    %v1147 = vunpack.c.l.b16 %v444
    %v1148 = vunpack.c.h.b16 %v444
    %v1149 = vunpack.c.l.b16 %v445
    %v1150 = vunpack.c.h.b16 %v445
    %v1151 = vunpack.c.l.b16 %v446
    %v1152 = vunpack.c.l.b16 %v447
    %v1153 = vunpack.c.h.b16 %v447
    %v1154 = vunpack.c.l.b16 %v448
    %v1155 = vunpack.c.h.b16 %v448
    %v1156 = vunpack.c.l.b16 %v449
    %v1157 = vunpack.c.h.b16 %v449
    %v1158 = vunpack.c.l.b16 %v450
    %v1159 = vunpack.c.l.b16 %v451
    %v1160 = vunpack.c.h.b16 %v451
    %v1161 = vunpack.c.l.b16 %v452
    %v1162 = vunpack.c.h.b16 %v452
    %v1163 = vunpack.c.l.b16 %v453
    %v1164 = vunpack.c.h.b16 %v453
    %v1165 = vunpack.c.l.b16 %v454
    %v1166 = vunpack.c.l.b16 %v455
    %v1167 = vunpack.c.h.b16 %v455
    %v1168 = vunpack.c.l.b16 %v456
    %v1169 = vunpack.c.h.b16 %v456
    %v1170 = vunpack.c.l.b16 %v457
    %v1171 = vunpack.c.h.b16 %v457
    %v1172 = vunpack.c.l.b16 %v458
    %v1173 = vunpack.c.l.b16 %v459
    %v1174 = vunpack.c.h.b16 %v459
    %v1175 = vunpack.c.l.b16 %v460
    %v1176 = vunpack.c.h.b16 %v460
    %v1177 = vunpack.c.l.b16 %v461
    %v1178 = vunpack.c.h.b16 %v461
    %v1179 = vunpack.c.l.b16 %v462
    %v1180 = vunpack.c.l.b16 %v463
    %v1181 = vunpack.c.h.b16 %v463
    %v1182 = vunpack.c.l.b16 %v464
    %v1183 = vunpack.c.h.b16 %v464
    %v1184 = vunpack.c.l.b16 %v465
    %v1185 = vunpack.c.h.b16 %v465
    %v1186 = vunpack.c.l.b16 %v466
    %v1187 = vunpack.c.l.b16 %v467
    %v1188 = vunpack.c.h.b16 %v467
    %v1189 = vunpack.c.l.b16 %v468
    %v1190 = vunpack.c.h.b16 %v468
    %v1191 = vunpack.c.l.b16 %v469
    %v1192 = vunpack.c.h.b16 %v469
    %v1193 = vunpack.c.l.b16 %v470
    %v1194 = vunpack.c.l.b16 %v471
    %v1195 = vunpack.c.h.b16 %v471
    %v1196 = vunpack.c.l.b16 %v472
    %v1197 = vunpack.c.h.b16 %v472
    %v1198 = vunpack.c.l.b16 %v473
    %v1199 = vunpack.c.h.b16 %v473
    %v1200 = vunpack.c.l.b16 %v474
    %v1201 = vunpack.c.l.b16 %v475
    %v1202 = vunpack.c.h.b16 %v475
    %v1203 = vunpack.c.l.b16 %v476
    %v1204 = vunpack.c.h.b16 %v476
    %v1205 = vunpack.c.l.b16 %v477
    %v1206 = vunpack.c.h.b16 %v477
    %v1207 = vunpack.c.l.b16 %v478
    %v1208 = vunpack.c.l.b16 %v479
    %v1209 = vunpack.c.h.b16 %v479
    %v1210 = vunpack.c.l.b16 %v480
    %v1211 = vunpack.c.h.b16 %v480
    %v1212 = vunpack.c.l.b16 %v481
    %v1213 = vunpack.c.h.b16 %v481
    %v1214 = vunpack.c.l.b16 %v482
    %v1215 = vunpack.c.l.b16 %v483
    %v1216 = vunpack.c.h.b16 %v483
    %v1217 = vunpack.c.l.b16 %v484
    %v1218 = vunpack.c.h.b16 %v484
    %v1219 = vunpack.c.l.b16 %v485
    %v1220 = vunpack.c.h.b16 %v485
    %v1221 = vunpack.c.l.b16 %v486
    %v1222 = vunpack.c.l.b16 %v487
    %v1223 = vunpack.c.h.b16 %v487
    %v1224 = vunpack.c.l.b16 %v488
    %v1225 = vunpack.c.h.b16 %v488
    %v1226 = vunpack.c.l.b16 %v489
    %v1227 = vunpack.c.h.b16 %v489
    %v1228 = vunpack.c.l.b16 %v490
    %v1229 = vunpack.c.l.b16 %v491
    %v1230 = vunpack.c.h.b16 %v491
    %v1231 = vunpack.c.l.b16 %v492
    %v1232 = vunpack.c.h.b16 %v492
    %v1233 = vunpack.c.l.b16 %v493
    %v1234 = vunpack.c.h.b16 %v493
    %v1235 = vunpack.c.l.b16 %v494
    %v1236 = vpack.c.b16 %v795, %v788
    %v1237 = vpack.c.b16 %v796, %v789
    %v1238 = vpack.c.b16 %v797, %v790
    %v1239 = vpack.c.b16 %v798, %v791
    %v1240 = vpack.c.b16 %v799, %v792
    %v1241 = vpack.c.b16 %v800, %v793
    %v1242 = vpack.c.b16 %v801, %v794
    %v1243 = vpack.c.b16 %v809, %v802
    %v1244 = vpack.c.b16 %v810, %v803
    %v1245 = vpack.c.b16 %v811, %v804
    %v1246 = vpack.c.b16 %v812, %v805
    %v1247 = vpack.c.b16 %v813, %v806
    %v1248 = vpack.c.b16 %v814, %v807
    %v1249 = vpack.c.b16 %v815, %v808
    %v1250 = vpack.c.b16 %v823, %v816
    %v1251 = vpack.c.b16 %v824, %v817
    %v1252 = vpack.c.b16 %v825, %v818
    %v1253 = vpack.c.b16 %v826, %v819
    %v1254 = vpack.c.b16 %v827, %v820
    %v1255 = vpack.c.b16 %v828, %v821
    %v1256 = vpack.c.b16 %v829, %v822
    %v1257 = vpack.c.b16 %v837, %v830
    %v1258 = vpack.c.b16 %v838, %v831
    %v1259 = vpack.c.b16 %v839, %v832
    %v1260 = vpack.c.b16 %v840, %v833
    %v1261 = vpack.c.b16 %v841, %v834
    %v1262 = vpack.c.b16 %v842, %v835
    %v1263 = vpack.c.b16 %v843, %v836
    %v1264 = vpack.c.b16 %v851, %v844
    %v1265 = vpack.c.b16 %v852, %v845
    %v1266 = vpack.c.b16 %v853, %v846
    %v1267 = vpack.c.b16 %v854, %v847
    %v1268 = vpack.c.b16 %v855, %v848
    %v1269 = vpack.c.b16 %v856, %v849
    %v1270 = vpack.c.b16 %v857, %v850
    %v1271 = vpack.c.b16 %v865, %v858
    %v1272 = vpack.c.b16 %v866, %v859
    %v1273 = vpack.c.b16 %v867, %v860
    %v1274 = vpack.c.b16 %v868, %v861
    %v1275 = vpack.c.b16 %v869, %v862
    %v1276 = vpack.c.b16 %v870, %v863
    %v1277 = vpack.c.b16 %v871, %v864
    %v1278 = vpack.c.b16 %v879, %v872
    %v1279 = vpack.c.b16 %v880, %v873
    %v1280 = vpack.c.b16 %v881, %v874
    %v1281 = vpack.c.b16 %v882, %v875
    %v1282 = vpack.c.b16 %v883, %v876
    %v1283 = vpack.c.b16 %v884, %v877
    %v1284 = vpack.c.b16 %v885, %v878
    %v1285 = vpack.c.b16 %v893, %v886
    %v1286 = vpack.c.b16 %v894, %v887
    %v1287 = vpack.c.b16 %v895, %v888
    %v1288 = vpack.c.b16 %v896, %v889
    %v1289 = vpack.c.b16 %v897, %v890
    %v1290 = vpack.c.b16 %v898, %v891
    %v1291 = vpack.c.b16 %v899, %v892
    %v1292 = vpack.c.b16 %v907, %v900
    %v1293 = vpack.c.b16 %v908, %v901
    %v1294 = vpack.c.b16 %v909, %v902
    %v1295 = vpack.c.b16 %v910, %v903
    %v1296 = vpack.c.b16 %v911, %v904
    %v1297 = vpack.c.b16 %v912, %v905
    %v1298 = vpack.c.b16 %v913, %v906
    %v1299 = vpack.c.b16 %v921, %v914
    %v1300 = vpack.c.b16 %v922, %v915
    %v1301 = vpack.c.b16 %v923, %v916
    %v1302 = vpack.c.b16 %v924, %v917
    %v1303 = vpack.c.b16 %v925, %v918
    %v1304 = vpack.c.b16 %v926, %v919
    %v1305 = vpack.c.b16 %v927, %v920
    %v1306 = vpack.c.b16 %v935, %v928
    %v1307 = vpack.c.b16 %v936, %v929
    %v1308 = vpack.c.b16 %v937, %v930
    %v1309 = vpack.c.b16 %v938, %v931
    %v1310 = vpack.c.b16 %v939, %v932
    %v1311 = vpack.c.b16 %v940, %v933
    %v1312 = vpack.c.b16 %v941, %v934
    %v1313 = vpack.c.b16 %v949, %v942
    %v1314 = vpack.c.b16 %v950, %v943
    %v1315 = vpack.c.b16 %v951, %v944
    %v1316 = vpack.c.b16 %v952, %v945
    %v1317 = vpack.c.b16 %v953, %v946
    %v1318 = vpack.c.b16 %v954, %v947
    %v1319 = vpack.c.b16 %v955, %v948
    %v1320 = vpack.c.b16 %v963, %v956
    %v1321 = vpack.c.b16 %v964, %v957
    %v1322 = vpack.c.b16 %v965, %v958
    %v1323 = vpack.c.b16 %v966, %v959
    %v1324 = vpack.c.b16 %v967, %v960
    %v1325 = vpack.c.b16 %v968, %v961
    %v1326 = vpack.c.b16 %v969, %v962
    %v1327 = vpack.c.b16 %v977, %v970
    %v1328 = vpack.c.b16 %v978, %v971
    %v1329 = vpack.c.b16 %v979, %v972
    %v1330 = vpack.c.b16 %v980, %v973
    %v1331 = vpack.c.b16 %v981, %v974
    %v1332 = vpack.c.b16 %v982, %v975
    %v1333 = vpack.c.b16 %v983, %v976
    %v1334 = vpack.c.b16 %v991, %v984
    %v1335 = vpack.c.b16 %v992, %v985
    %v1336 = vpack.c.b16 %v993, %v986
    %v1337 = vpack.c.b16 %v994, %v987
    %v1338 = vpack.c.b16 %v995, %v988
    %v1339 = vpack.c.b16 %v996, %v989
    %v1340 = vpack.c.b16 %v997, %v990
    %v1341 = vpack.c.b16 %v1005, %v998
    %v1342 = vpack.c.b16 %v1006, %v999
    %v1343 = vpack.c.b16 %v1007, %v1000
    %v1344 = vpack.c.b16 %v1008, %v1001
    %v1345 = vpack.c.b16 %v1009, %v1002
    %v1346 = vpack.c.b16 %v1010, %v1003
    %v1347 = vpack.c.b16 %v1011, %v1004
    %v1348 = vpack.c.b16 %v1019, %v1012
    %v1349 = vpack.c.b16 %v1020, %v1013
    %v1350 = vpack.c.b16 %v1021, %v1014
    %v1351 = vpack.c.b16 %v1022, %v1015
    %v1352 = vpack.c.b16 %v1023, %v1016
    %v1353 = vpack.c.b16 %v1024, %v1017
    %v1354 = vpack.c.b16 %v1025, %v1018
    %v1355 = vpack.c.b16 %v1033, %v1026
    %v1356 = vpack.c.b16 %v1034, %v1027
    %v1357 = vpack.c.b16 %v1035, %v1028
    %v1358 = vpack.c.b16 %v1036, %v1029
    %v1359 = vpack.c.b16 %v1037, %v1030
    %v1360 = vpack.c.b16 %v1038, %v1031
    %v1361 = vpack.c.b16 %v1039, %v1032
    %v1362 = vpack.c.b16 %v1047, %v1040
    %v1363 = vpack.c.b16 %v1048, %v1041
    %v1364 = vpack.c.b16 %v1049, %v1042
    %v1365 = vpack.c.b16 %v1050, %v1043
    %v1366 = vpack.c.b16 %v1051, %v1044
    %v1367 = vpack.c.b16 %v1052, %v1045
    %v1368 = vpack.c.b16 %v1053, %v1046
    %v1369 = vpack.c.b16 %v1061, %v1054
    %v1370 = vpack.c.b16 %v1062, %v1055
    %v1371 = vpack.c.b16 %v1063, %v1056
    %v1372 = vpack.c.b16 %v1064, %v1057
    %v1373 = vpack.c.b16 %v1065, %v1058
    %v1374 = vpack.c.b16 %v1066, %v1059
    %v1375 = vpack.c.b16 %v1067, %v1060
    %v1376 = vpack.c.b16 %v1075, %v1068
    %v1377 = vpack.c.b16 %v1076, %v1069
    %v1378 = vpack.c.b16 %v1077, %v1070
    %v1379 = vpack.c.b16 %v1078, %v1071
    %v1380 = vpack.c.b16 %v1079, %v1072
    %v1381 = vpack.c.b16 %v1080, %v1073
    %v1382 = vpack.c.b16 %v1081, %v1074
    %v1383 = vpack.c.b16 %v1089, %v1082
    %v1384 = vpack.c.b16 %v1090, %v1083
    %v1385 = vpack.c.b16 %v1091, %v1084
    %v1386 = vpack.c.b16 %v1092, %v1085
    %v1387 = vpack.c.b16 %v1093, %v1086
    %v1388 = vpack.c.b16 %v1094, %v1087
    %v1389 = vpack.c.b16 %v1095, %v1088
    %v1390 = vpack.c.b16 %v1103, %v1096
    %v1391 = vpack.c.b16 %v1104, %v1097
    %v1392 = vpack.c.b16 %v1105, %v1098
    %v1393 = vpack.c.b16 %v1106, %v1099
    %v1394 = vpack.c.b16 %v1107, %v1100
    %v1395 = vpack.c.b16 %v1108, %v1101
    %v1396 = vpack.c.b16 %v1109, %v1102
    %v1397 = vpack.c.b16 %v1117, %v1110
    %v1398 = vpack.c.b16 %v1118, %v1111
    %v1399 = vpack.c.b16 %v1119, %v1112
    %v1400 = vpack.c.b16 %v1120, %v1113
    %v1401 = vpack.c.b16 %v1121, %v1114
    %v1402 = vpack.c.b16 %v1122, %v1115
    %v1403 = vpack.c.b16 %v1123, %v1116
    %v1404 = vpack.c.b16 %v1131, %v1124
    %v1405 = vpack.c.b16 %v1132, %v1125
    %v1406 = vpack.c.b16 %v1133, %v1126
    %v1407 = vpack.c.b16 %v1134, %v1127
    %v1408 = vpack.c.b16 %v1135, %v1128
    %v1409 = vpack.c.b16 %v1136, %v1129
    %v1410 = vpack.c.b16 %v1137, %v1130
    %v1411 = vpack.c.b16 %v1145, %v1138
    %v1412 = vpack.c.b16 %v1146, %v1139
    %v1413 = vpack.c.b16 %v1147, %v1140
    %v1414 = vpack.c.b16 %v1148, %v1141
    %v1415 = vpack.c.b16 %v1149, %v1142
    %v1416 = vpack.c.b16 %v1150, %v1143
    %v1417 = vpack.c.b16 %v1151, %v1144
    %v1418 = vpack.c.b16 %v1159, %v1152
    %v1419 = vpack.c.b16 %v1160, %v1153
    %v1420 = vpack.c.b16 %v1161, %v1154
    %v1421 = vpack.c.b16 %v1162, %v1155
    %v1422 = vpack.c.b16 %v1163, %v1156
    %v1423 = vpack.c.b16 %v1164, %v1157
    %v1424 = vpack.c.b16 %v1165, %v1158
    %v1425 = vpack.c.b16 %v1173, %v1166
    %v1426 = vpack.c.b16 %v1174, %v1167
    %v1427 = vpack.c.b16 %v1175, %v1168
    %v1428 = vpack.c.b16 %v1176, %v1169
    %v1429 = vpack.c.b16 %v1177, %v1170
    %v1430 = vpack.c.b16 %v1178, %v1171
    %v1431 = vpack.c.b16 %v1179, %v1172
    %v1432 = vpack.c.b16 %v1187, %v1180
    %v1433 = vpack.c.b16 %v1188, %v1181
    %v1434 = vpack.c.b16 %v1189, %v1182
    %v1435 = vpack.c.b16 %v1190, %v1183
    %v1436 = vpack.c.b16 %v1191, %v1184
    %v1437 = vpack.c.b16 %v1192, %v1185
    %v1438 = vpack.c.b16 %v1193, %v1186
    %v1439 = vpack.c.b16 %v1201, %v1194
    %v1440 = vpack.c.b16 %v1202, %v1195
    %v1441 = vpack.c.b16 %v1203, %v1196
    %v1442 = vpack.c.b16 %v1204, %v1197
    %v1443 = vpack.c.b16 %v1205, %v1198
    %v1444 = vpack.c.b16 %v1206, %v1199
    %v1445 = vpack.c.b16 %v1207, %v1200
    %v1446 = vpack.c.b16 %v1215, %v1208
    %v1447 = vpack.c.b16 %v1216, %v1209
    %v1448 = vpack.c.b16 %v1217, %v1210
    %v1449 = vpack.c.b16 %v1218, %v1211
    %v1450 = vpack.c.b16 %v1219, %v1212
    %v1451 = vpack.c.b16 %v1220, %v1213
    %v1452 = vpack.c.b16 %v1221, %v1214
    %v1453 = vpack.c.b16 %v1229, %v1222
    %v1454 = vpack.c.b16 %v1230, %v1223
    %v1455 = vpack.c.b16 %v1231, %v1224
    %v1456 = vpack.c.b16 %v1232, %v1225
    %v1457 = vpack.c.b16 %v1233, %v1226
    %v1458 = vpack.c.b16 %v1234, %v1227
    %v1459 = vpack.c.b16 %v1235, %v1228
    %1684 = vmatprep.subr.bf16.mxu0 %v1286
    %1685 = vmatpush1.bf16.msra.mxu0 %v1285
    %1686 = vmatprep.subr.bf16.mxu0 %v1279
    %1687 = vmatpush1.bf16.msra.mxu0 %v1278
    %1688 = vmatprep.subr.bf16.mxu0 %v1272
    %1689 = vmatpush1.bf16.msra.mxu0 %v1271
    %1690 = vmatprep.subr.bf16.mxu0 %v1265
    %1691 = vmatpush1.bf16.msra.mxu0 %v1264
    %1692 = vmatprep.subr.bf16.mxu0 %v1258
    %1693 = vmatpush1.bf16.msra.mxu0 %v1257
    %1694 = vmatprep.subr.bf16.mxu0 %v1251
    %1695 = vmatpush1.bf16.msra.mxu0 %v1250
    %1696 = vmatprep.subr.bf16.mxu0 %v1244
    %1697 = vmatpush1.bf16.msra.mxu0 %v1243
    %1698 = vmatprep.subr.bf16.mxu0 %v1237
    %1699 = vmatpush1.bf16.msra.mxu0 %v1236
    %1700 = vmatprep.subr.bf16.mxu0 %v1342
    %1701 = vmatpush2.bf16.msra.mxu0 %v1341
    %1702 = vmatprep.subr.bf16.mxu0 %v1335
    %1703 = vmatpush2.bf16.msra.mxu0 %v1334
    %1704 = vmatprep.subr.bf16.mxu0 %v1328
    %1705 = vmatpush2.bf16.msra.mxu0 %v1327
    %1706 = vmatprep.subr.bf16.mxu0 %v1321
    %1707 = vmatpush2.bf16.msra.mxu0 %v1320
    %1708 = vmatprep.subr.bf16.mxu0 %v1314
    %1709 = vmatpush2.bf16.msra.mxu0 %v1313
    %1710 = vmatprep.subr.bf16.mxu0 %v1307
    %1711 = vmatpush2.bf16.msra.mxu0 %v1306
    %1712 = vmatprep.subr.bf16.mxu0 %v1300
    %1713 = vmatpush2.bf16.msra.mxu0 %v1299
    %1714 = vmatprep.subr.bf16.mxu0 %v1293
    %1715 = vmatpush2.bf16.msra.mxu0 %v1292
    %1716 = vmatprep.mubr.bf16.mxu0 %v236
    %1717 = vmatmul.mubr.bf16.gmra.mxu0 %v235
    %v1718 = vpop.f32.mrf.mxu0
    %v1719 = vadd.f32 %v500, %v1718
    %v1720 = vpop.f32.mrf.mxu0
    %v1721 = vadd.f32 %v504, %v1720
    %v1722 = vpop.f32.mrf.mxu0
    %v1723 = vpop.f32.mrf.mxu0
    %1724 = vdwg.mxu0
    %1725 = vmatprep.subr.bf16.mxu0 %v1398
    %1726 = vmatpush1.bf16.msra.mxu0 %v1397
    %1727 = vmatprep.subr.bf16.mxu0 %v1391
    %1728 = vmatpush1.bf16.msra.mxu0 %v1390
    %1729 = vmatprep.subr.bf16.mxu0 %v1384
    %1730 = vmatpush1.bf16.msra.mxu0 %v1383
    %1731 = vmatprep.subr.bf16.mxu0 %v1377
    %1732 = vmatpush1.bf16.msra.mxu0 %v1376
    %1733 = vmatprep.subr.bf16.mxu0 %v1370
    %1734 = vmatpush1.bf16.msra.mxu0 %v1369
    %1735 = vmatprep.subr.bf16.mxu0 %v1363
    %1736 = vmatpush1.bf16.msra.mxu0 %v1362
    %1737 = vmatprep.subr.bf16.mxu0 %v1356
    %1738 = vmatpush1.bf16.msra.mxu0 %v1355
    %1739 = vmatprep.subr.bf16.mxu0 %v1349
    %1740 = vmatpush1.bf16.msra.mxu0 %v1348
    %1741 = vmatprep.subr.bf16.mxu0 %v1454
    %1742 = vmatpush2.bf16.msra.mxu0 %v1453
    %1743 = vmatprep.subr.bf16.mxu0 %v1447
    %1744 = vmatpush2.bf16.msra.mxu0 %v1446
    %1745 = vmatprep.subr.bf16.mxu0 %v1440
    %1746 = vmatpush2.bf16.msra.mxu0 %v1439
    %1747 = vmatprep.subr.bf16.mxu0 %v1433
    %1748 = vmatpush2.bf16.msra.mxu0 %v1432
    %1749 = vmatprep.subr.bf16.mxu0 %v1426
    %1750 = vmatpush2.bf16.msra.mxu0 %v1425
    %1751 = vmatprep.subr.bf16.mxu0 %v1419
    %1752 = vmatpush2.bf16.msra.mxu0 %v1418
    %1753 = vmatprep.subr.bf16.mxu0 %v1412
    %1754 = vmatpush2.bf16.msra.mxu0 %v1411
    %1755 = vmatprep.subr.bf16.mxu0 %v1405
    %1756 = vmatpush2.bf16.msra.mxu0 %v1404
    %1757 = vmatprep.mubr.bf16.mxu0 %v238
    %1758 = vmatmul.mubr.bf16.gmra.mxu0 %v237
    %v1759 = vpop.f32.mrf.mxu0
    %v1760 = vadd.f32 %v1719, %v1759
    %v1761 = vpop.f32.mrf.mxu0
    %v1762 = vadd.f32 %v1721, %v1761
    %v1763 = vpop.f32.mrf.mxu0
    %v1764 = vpop.f32.mrf.mxu0
    %1765 = vdwg.mxu0
    %1766 = vmatprep.subr.bf16.mxu0 %v1288
    %1767 = vmatpush1.bf16.msra.mxu0 %v1287
    %1768 = vmatprep.subr.bf16.mxu0 %v1281
    %1769 = vmatpush1.bf16.msra.mxu0 %v1280
    %1770 = vmatprep.subr.bf16.mxu0 %v1274
    %1771 = vmatpush1.bf16.msra.mxu0 %v1273
    %1772 = vmatprep.subr.bf16.mxu0 %v1267
    %1773 = vmatpush1.bf16.msra.mxu0 %v1266
    %1774 = vmatprep.subr.bf16.mxu0 %v1260
    %1775 = vmatpush1.bf16.msra.mxu0 %v1259
    %1776 = vmatprep.subr.bf16.mxu0 %v1253
    %1777 = vmatpush1.bf16.msra.mxu0 %v1252
    %1778 = vmatprep.subr.bf16.mxu0 %v1246
    %1779 = vmatpush1.bf16.msra.mxu0 %v1245
    %1780 = vmatprep.subr.bf16.mxu0 %v1239
    %1781 = vmatpush1.bf16.msra.mxu0 %v1238
    %1782 = vmatprep.subr.bf16.mxu0 %v1344
    %1783 = vmatpush2.bf16.msra.mxu0 %v1343
    %1784 = vmatprep.subr.bf16.mxu0 %v1337
    %1785 = vmatpush2.bf16.msra.mxu0 %v1336
    %1786 = vmatprep.subr.bf16.mxu0 %v1330
    %1787 = vmatpush2.bf16.msra.mxu0 %v1329
    %1788 = vmatprep.subr.bf16.mxu0 %v1323
    %1789 = vmatpush2.bf16.msra.mxu0 %v1322
    %1790 = vmatprep.subr.bf16.mxu0 %v1316
    %1791 = vmatpush2.bf16.msra.mxu0 %v1315
    %1792 = vmatprep.subr.bf16.mxu0 %v1309
    %1793 = vmatpush2.bf16.msra.mxu0 %v1308
    %1794 = vmatprep.subr.bf16.mxu0 %v1302
    %1795 = vmatpush2.bf16.msra.mxu0 %v1301
    %1796 = vmatprep.subr.bf16.mxu0 %v1295
    %1797 = vmatpush2.bf16.msra.mxu0 %v1294
    %1798 = vmatprep.mubr.bf16.mxu0 %v236
    %1799 = vmatmul.mubr.bf16.gmra.mxu0 %v235
    %v1800 = vpop.f32.mrf.mxu0
    %v1801 = vadd.f32 %v508, %v1800
    %v1802 = vpop.f32.mrf.mxu0
    %v1803 = vadd.f32 %v512, %v1802
    %v1804 = vpop.f32.mrf.mxu0
    %v1805 = vpop.f32.mrf.mxu0
    %1806 = vdwg.mxu0
    %1807 = vmatprep.subr.bf16.mxu0 %v1400
    %1808 = vmatpush1.bf16.msra.mxu0 %v1399
    %1809 = vmatprep.subr.bf16.mxu0 %v1393
    %1810 = vmatpush1.bf16.msra.mxu0 %v1392
    %1811 = vmatprep.subr.bf16.mxu0 %v1386
    %1812 = vmatpush1.bf16.msra.mxu0 %v1385
    %1813 = vmatprep.subr.bf16.mxu0 %v1379
    %1814 = vmatpush1.bf16.msra.mxu0 %v1378
    %1815 = vmatprep.subr.bf16.mxu0 %v1372
    %1816 = vmatpush1.bf16.msra.mxu0 %v1371
    %1817 = vmatprep.subr.bf16.mxu0 %v1365
    %1818 = vmatpush1.bf16.msra.mxu0 %v1364
    %1819 = vmatprep.subr.bf16.mxu0 %v1358
    %1820 = vmatpush1.bf16.msra.mxu0 %v1357
    %1821 = vmatprep.subr.bf16.mxu0 %v1351
    %1822 = vmatpush1.bf16.msra.mxu0 %v1350
    %1823 = vmatprep.subr.bf16.mxu0 %v1456
    %1824 = vmatpush2.bf16.msra.mxu0 %v1455
    %1825 = vmatprep.subr.bf16.mxu0 %v1449
    %1826 = vmatpush2.bf16.msra.mxu0 %v1448
    %1827 = vmatprep.subr.bf16.mxu0 %v1442
    %1828 = vmatpush2.bf16.msra.mxu0 %v1441
    %1829 = vmatprep.subr.bf16.mxu0 %v1435
    %1830 = vmatpush2.bf16.msra.mxu0 %v1434
    %1831 = vmatprep.subr.bf16.mxu0 %v1428
    %1832 = vmatpush2.bf16.msra.mxu0 %v1427
    %1833 = vmatprep.subr.bf16.mxu0 %v1421
    %1834 = vmatpush2.bf16.msra.mxu0 %v1420
    %1835 = vmatprep.subr.bf16.mxu0 %v1414
    %1836 = vmatpush2.bf16.msra.mxu0 %v1413
    %1837 = vmatprep.subr.bf16.mxu0 %v1407
    %1838 = vmatpush2.bf16.msra.mxu0 %v1406
    %1839 = vmatprep.mubr.bf16.mxu0 %v238
    %1840 = vmatmul.mubr.bf16.gmra.mxu0 %v237
    %v1841 = vpop.f32.mrf.mxu0
    %v1842 = vadd.f32 %v1801, %v1841
    %v1843 = vpop.f32.mrf.mxu0
    %v1844 = vadd.f32 %v1803, %v1843
    %v1845 = vpop.f32.mrf.mxu0
    %v1846 = vpop.f32.mrf.mxu0
    %1847 = vdwg.mxu0
    %1848 = vmatprep.subr.bf16.mxu0 %v1290
    %1849 = vmatpush1.bf16.msra.mxu0 %v1289
    %1850 = vmatprep.subr.bf16.mxu0 %v1283
    %1851 = vmatpush1.bf16.msra.mxu0 %v1282
    %1852 = vmatprep.subr.bf16.mxu0 %v1276
    %1853 = vmatpush1.bf16.msra.mxu0 %v1275
    %1854 = vmatprep.subr.bf16.mxu0 %v1269
    %1855 = vmatpush1.bf16.msra.mxu0 %v1268
    %1856 = vmatprep.subr.bf16.mxu0 %v1262
    %1857 = vmatpush1.bf16.msra.mxu0 %v1261
    %1858 = vmatprep.subr.bf16.mxu0 %v1255
    %1859 = vmatpush1.bf16.msra.mxu0 %v1254
    %1860 = vmatprep.subr.bf16.mxu0 %v1248
    %1861 = vmatpush1.bf16.msra.mxu0 %v1247
    %1862 = vmatprep.subr.bf16.mxu0 %v1241
    %1863 = vmatpush1.bf16.msra.mxu0 %v1240
    %1864 = vmatprep.subr.bf16.mxu0 %v1346
    %1865 = vmatpush2.bf16.msra.mxu0 %v1345
    %1866 = vmatprep.subr.bf16.mxu0 %v1339
    %1867 = vmatpush2.bf16.msra.mxu0 %v1338
    %1868 = vmatprep.subr.bf16.mxu0 %v1332
    %1869 = vmatpush2.bf16.msra.mxu0 %v1331
    %1870 = vmatprep.subr.bf16.mxu0 %v1325
    %1871 = vmatpush2.bf16.msra.mxu0 %v1324
    %1872 = vmatprep.subr.bf16.mxu0 %v1318
    %1873 = vmatpush2.bf16.msra.mxu0 %v1317
    %1874 = vmatprep.subr.bf16.mxu0 %v1311
    %1875 = vmatpush2.bf16.msra.mxu0 %v1310
    %1876 = vmatprep.subr.bf16.mxu0 %v1304
    %1877 = vmatpush2.bf16.msra.mxu0 %v1303
    %1878 = vmatprep.subr.bf16.mxu0 %v1297
    %1879 = vmatpush2.bf16.msra.mxu0 %v1296
    %1880 = vmatprep.mubr.bf16.mxu0 %v236
    %1881 = vmatmul.mubr.bf16.gmra.mxu0 %v235
    %v1882 = vpop.f32.mrf.mxu0
    %v1883 = vadd.f32 %v516, %v1882
    %v1884 = vpop.f32.mrf.mxu0
    %v1885 = vadd.f32 %v520, %v1884
    %v1886 = vpop.f32.mrf.mxu0
    %v1887 = vpop.f32.mrf.mxu0
    %1888 = vdwg.mxu0
    %1889 = vmatprep.subr.bf16.mxu0 %v1402
    %1890 = vmatpush1.bf16.msra.mxu0 %v1401
    %1891 = vmatprep.subr.bf16.mxu0 %v1395
    %1892 = vmatpush1.bf16.msra.mxu0 %v1394
    %1893 = vmatprep.subr.bf16.mxu0 %v1388
    %1894 = vmatpush1.bf16.msra.mxu0 %v1387
    %1895 = vmatprep.subr.bf16.mxu0 %v1381
    %1896 = vmatpush1.bf16.msra.mxu0 %v1380
    %1897 = vmatprep.subr.bf16.mxu0 %v1374
    %1898 = vmatpush1.bf16.msra.mxu0 %v1373
    %1899 = vmatprep.subr.bf16.mxu0 %v1367
    %1900 = vmatpush1.bf16.msra.mxu0 %v1366
    %1901 = vmatprep.subr.bf16.mxu0 %v1360
    %1902 = vmatpush1.bf16.msra.mxu0 %v1359
    %1903 = vmatprep.subr.bf16.mxu0 %v1353
    %1904 = vmatpush1.bf16.msra.mxu0 %v1352
    %1905 = vmatprep.subr.bf16.mxu0 %v1458
    %1906 = vmatpush2.bf16.msra.mxu0 %v1457
    %1907 = vmatprep.subr.bf16.mxu0 %v1451
    %1908 = vmatpush2.bf16.msra.mxu0 %v1450
    %1909 = vmatprep.subr.bf16.mxu0 %v1444
    %1910 = vmatpush2.bf16.msra.mxu0 %v1443
    %1911 = vmatprep.subr.bf16.mxu0 %v1437
    %1912 = vmatpush2.bf16.msra.mxu0 %v1436
    %1913 = vmatprep.subr.bf16.mxu0 %v1430
    %1914 = vmatpush2.bf16.msra.mxu0 %v1429
    %1915 = vmatprep.subr.bf16.mxu0 %v1423
    %1916 = vmatpush2.bf16.msra.mxu0 %v1422
    %1917 = vmatprep.subr.bf16.mxu0 %v1416
    %1918 = vmatpush2.bf16.msra.mxu0 %v1415
    %1919 = vmatprep.subr.bf16.mxu0 %v1409
    %1920 = vmatpush2.bf16.msra.mxu0 %v1408
    %1921 = vmatprep.mubr.bf16.mxu0 %v238
    %1922 = vmatmul.mubr.bf16.gmra.mxu0 %v237
    %v1923 = vpop.f32.mrf.mxu0
    %v1924 = vadd.f32 %v1883, %v1923
    %v1925 = vpop.f32.mrf.mxu0
    %v1926 = vadd.f32 %v1885, %v1925
    %v1927 = vpop.f32.mrf.mxu0
    %v1928 = vpop.f32.mrf.mxu0
    %1929 = vdwg.mxu0
    %1930 = vmatprep.subr.bf16.mxu0 0
    %1931 = vmatpush1.bf16.msra.mxu0 %v1291
    %1932 = vmatprep.subr.bf16.mxu0 0
    %1933 = vmatpush1.bf16.msra.mxu0 %v1284
    %1934 = vmatprep.subr.bf16.mxu0 0
    %1935 = vmatpush1.bf16.msra.mxu0 %v1277
    %1936 = vmatprep.subr.bf16.mxu0 0
    %1937 = vmatpush1.bf16.msra.mxu0 %v1270
    %1938 = vmatprep.subr.bf16.mxu0 0
    %1939 = vmatpush1.bf16.msra.mxu0 %v1263
    %1940 = vmatprep.subr.bf16.mxu0 0
    %1941 = vmatpush1.bf16.msra.mxu0 %v1256
    %1942 = vmatprep.subr.bf16.mxu0 0
    %1943 = vmatpush1.bf16.msra.mxu0 %v1249
    %1944 = vmatprep.subr.bf16.mxu0 0
    %1945 = vmatpush1.bf16.msra.mxu0 %v1242
    %1946 = vmatprep.subr.bf16.mxu0 0
    %1947 = vmatpush2.bf16.msra.mxu0 %v1347
    %1948 = vmatprep.subr.bf16.mxu0 0
    %1949 = vmatpush2.bf16.msra.mxu0 %v1340
    %1950 = vmatprep.subr.bf16.mxu0 0
    %1951 = vmatpush2.bf16.msra.mxu0 %v1333
    %1952 = vmatprep.subr.bf16.mxu0 0
    %1953 = vmatpush2.bf16.msra.mxu0 %v1326
    %1954 = vmatprep.subr.bf16.mxu0 0
    %1955 = vmatpush2.bf16.msra.mxu0 %v1319
    %1956 = vmatprep.subr.bf16.mxu0 0
    %1957 = vmatpush2.bf16.msra.mxu0 %v1312
    %1958 = vmatprep.subr.bf16.mxu0 0
    %1959 = vmatpush2.bf16.msra.mxu0 %v1305
    %1960 = vmatprep.subr.bf16.mxu0 0
    %1961 = vmatpush2.bf16.msra.mxu0 %v1298
    %1962 = vmatprep.mubr.bf16.mxu0 %v236
    %1963 = vmatmul.mubr.bf16.gmra.mxu0 %v235
    %v1964 = vpop.f32.mrf.mxu0
    %v1965 = vadd.f32 %v524, %v1964
    %v1966 = vpop.f32.mrf.mxu0
    %v1967 = vpop.f32.mrf.mxu0
    %v1968 = vpop.f32.mrf.mxu0
    %1969 = vdwg.mxu0
    %1970 = vmatprep.subr.bf16.mxu0 0
    %1971 = vmatpush1.bf16.msra.mxu0 %v1403
    %1972 = vmatprep.subr.bf16.mxu0 0
    %1973 = vmatpush1.bf16.msra.mxu0 %v1396
    %1974 = vmatprep.subr.bf16.mxu0 0
    %1975 = vmatpush1.bf16.msra.mxu0 %v1389
    %1976 = vmatprep.subr.bf16.mxu0 0
    %1977 = vmatpush1.bf16.msra.mxu0 %v1382
    %1978 = vmatprep.subr.bf16.mxu0 0
    %1979 = vmatpush1.bf16.msra.mxu0 %v1375
    %1980 = vmatprep.subr.bf16.mxu0 0
    %1981 = vmatpush1.bf16.msra.mxu0 %v1368
    %1982 = vmatprep.subr.bf16.mxu0 0
    %1983 = vmatpush1.bf16.msra.mxu0 %v1361
    %1984 = vmatprep.subr.bf16.mxu0 0
    %1985 = vmatpush1.bf16.msra.mxu0 %v1354
    %1986 = vmatprep.subr.bf16.mxu0 0
    %1987 = vmatpush2.bf16.msra.mxu0 %v1459
    %1988 = vmatprep.subr.bf16.mxu0 0
    %1989 = vmatpush2.bf16.msra.mxu0 %v1452
    %1990 = vmatprep.subr.bf16.mxu0 0
    %1991 = vmatpush2.bf16.msra.mxu0 %v1445
    %1992 = vmatprep.subr.bf16.mxu0 0
    %1993 = vmatpush2.bf16.msra.mxu0 %v1438
    %1994 = vmatprep.subr.bf16.mxu0 0
    %1995 = vmatpush2.bf16.msra.mxu0 %v1431
    %1996 = vmatprep.subr.bf16.mxu0 0
    %1997 = vmatpush2.bf16.msra.mxu0 %v1424
    %1998 = vmatprep.subr.bf16.mxu0 0
    %1999 = vmatpush2.bf16.msra.mxu0 %v1417
    %2000 = vmatprep.subr.bf16.mxu0 0
    %2001 = vmatpush2.bf16.msra.mxu0 %v1410
    %2002 = vmatprep.mubr.bf16.mxu0 %v238
    %2003 = vmatmul.mubr.bf16.gmra.mxu0 %v237
    %v2004 = vpop.f32.mrf.mxu0
    %v2005 = vadd.f32 %v1965, %v2004
    %v2006 = vpop.f32.mrf.mxu0
    %v2007 = vpop.f32.mrf.mxu0
    %v2008 = vpop.f32.mrf.mxu0
    %2009 = vdwg.mxu0
    %v2010 = vxor.u32 %v1760, 2147483648
    %v2011 = vxor.u32 %v1762, 2147483648
    %v2012 = vxor.u32 %v1842, 2147483648
    %v2013 = vxor.u32 %v1844, 2147483648
    %v2014 = vxor.u32 %v1924, 2147483648
    %v2015 = vxor.u32 %v1926, 2147483648
    %v2016 = vxor.u32 %v2005, 2147483648
    %v2017 = vmul.f32 %v2010, 1.442695
    %v2018 = vpow.pop %v2017
    %v2019 = vmul.f32 %v2011, 1.442695
    %v2020 = vpow.pop %v2019
    %v2021 = vmul.f32 %v2012, 1.442695
    %v2022 = vpow.pop %v2021
    %v2023 = vmul.f32 %v2013, 1.442695
    %v2024 = vpow.pop %v2023
    %v2025 = vmul.f32 %v2014, 1.442695
    %v2026 = vpow.pop %v2025
    %v2027 = vmul.f32 %v2015, 1.442695
    %v2028 = vpow.pop %v2027
    %v2029 = vmul.f32 %v2016, 1.442695
    %v2030 = vpow.pop %v2029
    %v2031 = vadd.f32 %v2018, 1.0
    %v2032 = vadd.f32 %v2020, 1.0
    %v2033 = vadd.f32 %v2022, 1.0
    %v2034 = vadd.f32 %v2024, 1.0
    %v2035 = vadd.f32 %v2026, 1.0
    %v2036 = vadd.f32 %v2028, 1.0
    %v2037 = vadd.f32 %v2030, 1.0
    %v2038 = vrcp.pop %v2031
    %v2039 = vmul.f32 1.0, %v2038
    %v2040 = vrcp.pop %v2032
    %v2041 = vmul.f32 1.0, %v2040
    %v2042 = vrcp.pop %v2033
    %v2043 = vmul.f32 1.0, %v2042
    %v2044 = vrcp.pop %v2034
    %v2045 = vmul.f32 1.0, %v2044
    %v2046 = vrcp.pop %v2035
    %v2047 = vmul.f32 1.0, %v2046
    %v2048 = vrcp.pop %v2036
    %v2049 = vmul.f32 1.0, %v2048
    %v2050 = vrcp.pop %v2037
    %v2051 = vmul.f32 1.0, %v2050
    %2052 = vst [vmem:[#allocation2] sm:$0xff] %v2039
    %2053 = vst [vmem:[#allocation2 + $0x8] sm:$0xff] %v2041
    %2054 = vst [vmem:[#allocation2 + $0x10] sm:$0xff] %v2043
    %2055 = vst [vmem:[#allocation2 + $0x18] sm:$0xff] %v2045
    %2056 = vst [vmem:[#allocation2 + $0x20] sm:$0xff] %v2047
    %2057 = vst [vmem:[#allocation2 + $0x28] sm:$0xff] %v2049
    %vm2058 = vcmask 130048
    %2059 = vst.msk [vmem:[#allocation2 + $0x30] sm:$0xff] %vm2058, %v2051
    // Predicated region
    $region22: #{tpu_custom_call.1} parent=1 // pred_check
      _
    $region23: #{tpu_custom_call.1} parent=1 // pred_check_branch
      %2061 = sbr.rel (0) target = $region25
    $region24: #{tpu_custom_call.1} parent=1 // pred_region
      %s2063 = ssub.s32 896, 896
      %2064 = vsyncadd [#allocation3], %s2063
      %s2066 = sshll.u32 [#allocation2], 4
      %s2067 = int_to_ptr.vmem [resolvable:$true] %s2066
      %2069 = dma.vmem_to_hbm [thread:$0]  %s2067, 896, %s5, [#allocation3]
    $region25: #{tpu_custom_call.1} parent=1 // pred_fallthru
      _
    // Predicated region
    $region26: #{tpu_custom_call.1} parent=1 // pred_check
      _
    $region27: #{tpu_custom_call.1} parent=1 // pred_check_branch
      %2071 = sbr.rel (0) target = $region29
    $region28: #{tpu_custom_call.1} parent=1 // pred_region
      %2072 = dma.done [#allocation3], 896
    $region29: #{tpu_custom_call.1} parent=1 // pred_fallthru
      _
    %2073 = vsyncpa [#allocation3], 1

</llo_original>
